<compile_context>
chip_gen: v7x
topology: tpu7x:2x2x1
jax: 0.10.0
libtpu: 0.0.40
codegen_flags: <defaults>
</compile_context>

<pallas_src>
import math

import jax
import jax.numpy as jnp
from jax.experimental import pallas as pl
from jax.experimental.pallas import tpu as pltpu


def _round_up(x, m):
    return ((x + m - 1) // m) * m


def _matmul_bias_acc_kernel(x_ref, w_ref, b_ref, o_ref, acc_ref):
    """Multi-K-step path.

    x_ref: (tm, tk) f32, w_ref: (tk, tn) f32, b_ref: (1, tn) f32,
    o_ref: (tm, tn) out dtype, acc_ref: (tm, tn) f32 VMEM scratch.
    """
    k = pl.program_id(2)

    @pl.when(k == 0)
    def _():
        acc_ref[...] = jnp.zeros_like(acc_ref)

    # Cast to bf16 in-kernel (full-rate MXU) and accumulate in f32.
    acc_ref[...] += jnp.dot(
        x_ref[...].astype(jnp.bfloat16),
        w_ref[...].astype(jnp.bfloat16),
        preferred_element_type=jnp.float32,
    )

    @pl.when(k == pl.num_programs(2) - 1)
    def _():
        o_ref[...] = (acc_ref[...] + b_ref[...]).astype(o_ref.dtype)


def _matmul_bias_1k_kernel(x_ref, w_ref, b_ref, o_ref):
    """Single-K-step fast path: no scratch, no pl.when, no acc->out copy."""
    acc = jnp.dot(
        x_ref[...].astype(jnp.bfloat16),
        w_ref[...].astype(jnp.bfloat16),
        preferred_element_type=jnp.float32,
    )
    o_ref[...] = (acc + b_ref[...]).astype(o_ref.dtype)


def _tiled_matmul_bias(x2, w2, b2, out_dtype):
    """(M, K) @ (K, N) + (1, N) with a tiled, pipelined Pallas kernel."""
    M, K = x2.shape
    K2, N = w2.shape
    assert K == K2

    xf = x2.astype(jnp.float32)
    wf = w2.astype(jnp.float32)
    bf = b2.astype(jnp.float32).reshape(1, N)

    # Tile sizes: lane-dense (128-multiple) N, sublane-aligned M, 512-deep K.
    # Double-buffered working set (f32 inputs):
    #   2*(256*512*4 + 512*512*4) + acc 512K + out ~1M  ~= 5 MiB
    # -> fits v5e's 16 MiB scoped default; keeps >=2 blocks on the M axis for
    #    typical M so both v7x TensorCores are busy.
    tm = min(256, _round_up(M, 16))
    tn = min(512, _round_up(N, 128))
    tk = min(512, _round_up(K, 128))

    M_pad = _round_up(M, tm)
    N_pad = _round_up(N, tn)
    K_pad = _round_up(K, tk)

    # Zero-pad only when a dim does not divide the tile (no-op for the shapes
    # used here, so no extra HBM passes are emitted).
    if (M_pad, K_pad) != (M, K):
        xf = jnp.pad(xf, ((0, M_pad - M), (0, K_pad - K)))
    if (K_pad, N_pad) != (K, N):
        wf = jnp.pad(wf, ((0, K_pad - K), (0, N_pad - N)))
    if N_pad != N:
        bf = jnp.pad(bf, ((0, 0), (0, N_pad - N)))

    nk = K_pad // tk
    grid_mn = (M_pad // tm, N_pad // tn)

    cost = pl.CostEstimate(
        flops=2 * M_pad * N_pad * K_pad,
        bytes_accessed=(
            M_pad * K_pad * 4
            + K_pad * N_pad * 4
            + M_pad * N_pad * jnp.dtype(out_dtype).itemsize
            + N_pad * 4
        ),
        transcendentals=0,
    )

    if nk == 1:
        out = pl.pallas_call(
            _matmul_bias_1k_kernel,
            out_shape=jax.ShapeDtypeStruct((M_pad, N_pad), out_dtype),
            grid_spec=pltpu.PrefetchScalarGridSpec(
                num_scalar_prefetch=0,
                grid=grid_mn,
                in_specs=[
                    pl.BlockSpec((tm, tk), lambda i, j: (i, 0)),
                    pl.BlockSpec((tk, tn), lambda i, j: (0, j)),
                    pl.BlockSpec((1, tn), lambda i, j: (0, j)),
                ],
                out_specs=pl.BlockSpec((tm, tn), lambda i, j: (i, j)),
            ),
            compiler_params=pltpu.CompilerParams(
                dimension_semantics=("parallel", "parallel"),
            ),
            cost_estimate=cost,
        )(xf, wf, bf)
    else:
        out = pl.pallas_call(
            _matmul_bias_acc_kernel,
            out_shape=jax.ShapeDtypeStruct((M_pad, N_pad), out_dtype),
            grid_spec=pltpu.PrefetchScalarGridSpec(
                num_scalar_prefetch=0,
                grid=(*grid_mn, nk),
                in_specs=[
                    pl.BlockSpec((tm, tk), lambda i, j, k: (i, k)),
                    pl.BlockSpec((tk, tn), lambda i, j, k: (k, j)),
                    pl.BlockSpec((1, tn), lambda i, j, k: (0, j)),
                ],
                out_specs=pl.BlockSpec((tm, tn), lambda i, j, k: (i, j)),
                scratch_shapes=[pltpu.VMEM((tm, tn), jnp.float32)],
            ),
            compiler_params=pltpu.CompilerParams(
                dimension_semantics=("parallel", "parallel", "arbitrary"),
            ),
            cost_estimate=cost,
        )(xf, wf, bf)

    if (M_pad, N_pad) != (M, N):
        out = out[:M, :N]
    return out


def linear_general(x, weight, bias, n_contract=1):
    """Equivalent of LinearGeneral.forward:
        torch.tensordot(x, weight, dims=(last n_contract dims of x,
                                         first n_contract dims of weight)) + bias
    Covers both dims=([2],[0]) (q/k/v proj) and dims=([2,3],[0,1]) (out proj).
    """
    batch_shape = x.shape[: x.ndim - n_contract]
    contract_shape = x.shape[x.ndim - n_contract:]
    assert weight.shape[:n_contract] == contract_shape
    feat_shape = weight.shape[n_contract:]

    M = math.prod(batch_shape)
    K = math.prod(contract_shape)
    N = math.prod(feat_shape)

    x2 = x.reshape(M, K)
    w2 = weight.reshape(K, N)
    b2 = bias.reshape(1, N)

    out2 = _tiled_matmul_bias(x2, w2, b2, x.dtype)
    return out2.reshape(*batch_shape, *feat_shape)


def fused_qkv_projection(x, w_q, b_q, w_k, b_k, w_v, b_v):
    """Fused q/k/v LinearGeneral: one pallas_call with weights concatenated
    along N, so x is streamed from HBM once instead of three times."""
    B, S, in_dim = x.shape
    heads, head_dim = w_q.shape[1], w_q.shape[2]
    n1 = heads * head_dim

    w_cat = jnp.concatenate(
        [w.reshape(in_dim, n1) for w in (w_q, w_k, w_v)], axis=1)
    b_cat = jnp.concatenate(
        [b.reshape(1, n1) for b in (b_q, b_k, b_v)], axis=1)

    out = _tiled_matmul_bias(x.reshape(B * S, in_dim), w_cat, b_cat, x.dtype)
    out = out.reshape(B, S, 3, heads, head_dim)
    return out[:, :, 0], out[:, :, 1], out[:, :, 2]


if __name__ == "__main__":
    # Shapes consistent with SelfAttention inside CNNTransformer, scaled down:
    #   seq = patch_h * patch_w = 16 * 16 = 256, emb_dim = heads * head_dim.
    B, S = 2, 256
    in_dim, heads, head_dim = 512, 8, 64

    key = jax.random.PRNGKey(0)
    kx, kq, kk, kv, ko, kbq, kbk, kbv, kbo = jax.random.split(key, 9)

    x = jax.random.normal(kx, (B, S, in_dim), dtype=jnp.float32)
    # Parameters mirroring LinearGeneral.__init__ (weight ~ randn); biases made
    # nonzero here to exercise the bias-add path of the kernel.
    w_q = jax.random.normal(kq, (in_dim, heads, head_dim), dtype=jnp.float32)
    w_k = jax.random.normal(kk, (in_dim, heads, head_dim), dtype=jnp.float32)
    w_v = jax.random.normal(kv, (in_dim, heads, head_dim), dtype=jnp.float32)
    b_q = 0.1 * jax.random.normal(kbq, (heads, head_dim), dtype=jnp.float32)
    b_k = 0.1 * jax.random.normal(kbk, (heads, head_dim), dtype=jnp.float32)
    b_v = 0.1 * jax.random.normal(kbv, (heads, head_dim), dtype=jnp.float32)
    w_out = jax.random.normal(ko, (heads, head_dim, in_dim), dtype=jnp.float32)
    b_out = 0.1 * jax.random.normal(kbo, (in_dim,), dtype=jnp.float32)

    # Fused q/k/v projection (dims=([2],[0]) x3, one kernel launch).
    q, k_, v = fused_qkv_projection(x, w_q, b_q, w_k, b_k, w_v, b_v)
    # Output projection: dims=([2, 3], [0, 1]).
    o = linear_general(q, w_out, b_out, n_contract=2)
    o = jax.block_until_ready(o)

    # Reference (same bf16 input rounding, f32 math) in plain JAX.
    def ref_lg(xr, wr, br, n_contract):
        xc = xr.astype(jnp.bfloat16).astype(jnp.float32)
        wc = wr.astype(jnp.bfloat16).astype(jnp.float32)
        axes = (
            tuple(range(xr.ndim - n_contract, xr.ndim)),
            tuple(range(n_contract)),
        )
        return (
            jnp.tensordot(xc, wc, axes=axes, precision=jax.lax.Precision.HIGHEST)
            + br
        )

    q_ref = ref_lg(x, w_q, b_q, 1)
    k_ref = ref_lg(x, w_k, b_k, 1)
    v_ref = ref_lg(x, w_v, b_v, 1)
    o_ref = ref_lg(q_ref, w_out, b_out, 2)

    def rel_err(a, b):
        a = a.astype(jnp.float32).ravel()
        b = b.astype(jnp.float32).ravel()
        return jnp.linalg.norm(a - b) / (jnp.linalg.norm(b) + 1e-6)

    assert q.shape == (B, S, heads, head_dim)
    assert k_.shape == (B, S, heads, head_dim)
    assert v.shape == (B, S, heads, head_dim)
    assert o.shape == (B, S, in_dim)
    assert float(rel_err(q, q_ref)) < 2e-2
    assert float(rel_err(k_, k_ref)) < 2e-2
    assert float(rel_err(v, v_ref)) < 2e-2
    assert float(rel_err(o, o_ref)) < 2e-2

    print("KERNEL_OK")
</pallas_src>

<mosaic_0001>
module attributes {stable_mosaic.version = 11 : i64} {
  func.func @_matmul_bias_1k_kernel(%arg0: i32, %arg1: i32, %arg2: memref<256x512xf32, #tpu.memory_space<vmem>>, %arg3: memref<512x512xf32, #tpu.memory_space<vmem>>, %arg4: memref<1x512xf32, #tpu.memory_space<vmem>>, %arg5: memref<256x512xf32, #tpu.memory_space<vmem>>) attributes {dimension_semantics = [#tpu.dimension_semantics<parallel>, #tpu.dimension_semantics<parallel>], iteration_bounds = array<i64: 2, 3>, scalar_prefetch = 0 : i64, scratch_operands = 0 : i64, tpu.core_type = #tpu.core_type<tc>, window_params = [{transform_indices = @transform_0, window_bounds = array<i64: 256, 512>}, {transform_indices = @transform_1, window_bounds = array<i64: 512, 512>}, {transform_indices = @transform_2, window_bounds = array<i64: 1, 512>}, {transform_indices = @transform_3, window_bounds = array<i64: 256, 512>}]} {
    %c0 = arith.constant 0 : index
    %c0_0 = arith.constant 0 : index
    %0 = vector.load %arg2[%c0, %c0_0] : memref<256x512xf32, #tpu.memory_space<vmem>>, vector<256x512xf32>
    %1 = arith.truncf %0 : vector<256x512xf32> to vector<256x512xbf16>
    %c0_1 = arith.constant 0 : index
    %c0_2 = arith.constant 0 : index
    %2 = vector.load %arg3[%c0_1, %c0_2] : memref<512x512xf32, #tpu.memory_space<vmem>>, vector<512x512xf32>
    %3 = arith.truncf %2 : vector<512x512xf32> to vector<512x512xbf16>
    %cst = arith.constant dense<0.000000e+00> : vector<256x512xf32>
    %4 = tpu.matmul %1, %3, %cst {dimension_numbers = #tpu.dot_dimension_numbers<[1], [0], [0], [1], [0, 0, 1, 1], [], []>} : vector<256x512xbf16>, vector<512x512xbf16>, vector<256x512xf32> -> vector<256x512xf32>
    %c0_3 = arith.constant 0 : index
    %c0_4 = arith.constant 0 : index
    %5 = vector.load %arg4[%c0_3, %c0_4] : memref<1x512xf32, #tpu.memory_space<vmem>>, vector<1x512xf32>
    %6 = vector.broadcast %5 : vector<1x512xf32> to vector<256x512xf32>
    %7 = arith.addf %4, %6 : vector<256x512xf32>
    %c0_5 = arith.constant 0 : index
    %c0_6 = arith.constant 0 : index
    %8 = vector.load %arg5[%c0_5, %c0_6] : memref<256x512xf32, #tpu.memory_space<vmem>>, vector<256x512xf32>
    tpu.vector_store %arg5[%c0_5, %c0_6], %7 {strides = array<i32>} : memref<256x512xf32, #tpu.memory_space<vmem>>, vector<256x512xf32>,
    return
  }
  func.func @transform_0(%arg0: i32, %arg1: i32) -> (i32, i32) {
    %c0_i32 = arith.constant 0 : i32
    %c0_i32_0 = arith.constant 0 : i32
    return %arg0, %c0_i32 : i32, i32
  }
  func.func @transform_1(%arg0: i32, %arg1: i32) -> (i32, i32) {
    %c0_i32 = arith.constant 0 : i32
    %c0_i32_0 = arith.constant 0 : i32
    return %c0_i32, %arg1 : i32, i32
  }
  func.func @transform_2(%arg0: i32, %arg1: i32) -> (i32, i32) {
    %c0_i32 = arith.constant 0 : i32
    %c0_i32_0 = arith.constant 0 : i32
    return %c0_i32, %arg1 : i32, i32
  }
  func.func @transform_3(%arg0: i32, %arg1: i32) -> (i32, i32) {
    %c0_i32 = arith.constant 0 : i32
    return %arg0, %arg1 : i32, i32
  }
}

</mosaic_0001>

<llo_original>
// kernel: tpu_custom_call.1
$region0: #{tpu_custom_call.1}
  #allocation0 [shape = 'u32[]', space=smem, size = 0x4, offset = 0x4, fixed_abs, tag = 'smem constant byte address 0x4 - core index']
  #allocation1 [shape = 'u32[144,128]{1,0:T(1,128)}', space=vmem, size = 0x12000, scoped, tag = 'internal scratch']
  %s0 = inlined_call_operand.hbm [shape: f32[512,512], index: 0, kind: input, shape index: {}]
  %s1 = inlined_call_operand.hbm [shape: f32[512,1536], index: 1, kind: input, shape index: {}]
  %s2 = inlined_call_operand.hbm [shape: f32[1,1536], index: 2, kind: input, shape index: {}]
  %s3 = inlined_call_operand.hbm [shape: f32[512,1536], index: 3, kind: output, shape index: {}]
  %s4 = sld [smem:[#allocation0]]
  $region57: #{tpu_custom_call.1} parent=0
    _
  %s6 = ssub.s32 1, %s4
  %s7 = scalar_select 0, %s6, %s4
  $region1: #{tpu_custom_call.1} parent=0
    #allocation2 [shape = 'u8[1048576]{0}', space=vmem, size = 0x100000, scoped, tag = 'input window, operand 0']
    #allocation3 [shape = 's32[2]{0}', space=sflag, size = 0x8, scoped, tag = 'scoped memory for tpu_custom_call.1']
    #allocation4 [shape = 's32[2]{0}', space=sflag, size = 0x8, scoped, tag = 'scoped memory for tpu_custom_call.1']
    #allocation5 [shape = 'u8[2097152]{0}', space=vmem, size = 0x200000, scoped, tag = 'input window, operand 1']
    #allocation6 [shape = 's32[2]{0}', space=sflag, size = 0x8, scoped, tag = 'scoped memory for tpu_custom_call.1']
    #allocation7 [shape = 'u8[4096]{0}', space=vmem, size = 0x1000, scoped, tag = 'input window, operand 2']
    #allocation8 [shape = 'u8[1048576]{0}', space=vmem, size = 0x100000, scoped, tag = 'output window, operand 0']
    %8 = vsyncpa [#allocation3], 0
    %s9 = scalar_lea.sflag [#allocation3], 1
    %10 = vsyncpa %s9, 0
    %11 = vsyncpa [#allocation6], 0
    %s12 = scalar_lea.sflag [#allocation6], 1
    %13 = vsyncpa %s12, 0
    %14 = vsyncpa [#allocation4], 0
    %s15 = scalar_lea.sflag [#allocation4], 1
    %16 = vsyncpa %s15, 0
    loop: start=0, step=1, limit=8
    $region2: #{tpu_custom_call.1} parent=1 // loop_pre_header
      _
    $region3: #{tpu_custom_call.1} parent=1 // loop_header
      %s18 = sphi 0, %s22
      %p19 = scmp.ge.s32.totalorder %s18, 8
      %s25 = sphi 0, %s37
      %s26 = sphi 0, %s33
      %s27 = sphi 0, %s25
      %s28 = sphi 0, %s26
      %s29 = sphi 0, %s27
      %s30 = sphi 0, %s28
      %s40 = sphi 0, %s42
      %s43 = sphi 0, %s40
      %s44 = sphi 0, %s43
      %s60 = sphi 0, %s44
      %s66 = sphi 0, %s68
      %s69 = sphi 0, %s66
      %s70 = sphi 0, %s69
      %s86 = sphi 0, %s70
      %s92 = sphi 0, %s94
      %s95 = sphi 0, %s92
      %s96 = sphi 0, %s95
      %s112 = sphi 0, %s96
      %s120 = sphi 0, %s122
      %s123 = sphi 0, %s120
      %s124 = sphi 0, %s123
      %s140 = sphi 0, %s124
    $region4: #{tpu_custom_call.1} parent=1 // loop_header_branch
      %21 = sbr.rel (%p19) target = $region8
    $region5: #{tpu_custom_call.1} parent=1 // loop_body
      %s23 = ssub.s32 %s18, 1
      %s24 = ssub.s32 %s18, 2
      %s31 = sadd.s32 1, %s26
      %p32 = scmp.ge.s32.totalorder %s31, 3
      %s33 = scalar_select %p32, 0, %s31
      %s34 = sadd.s32 1, %s25
      %s35 = scalar_select %p32, %s34, %s25
      %p36 = scmp.ge.s32.totalorder %s35, 2
      %s37 = scalar_select %p36, 0, %s35
      %s38 = ssub.s32 %s25, %s37
      %p39 = scmp.eq.s32.totalorder %s38, 0
      %s41 = sadd.s32 %s40, 1
      %s42 = scalar_select %p39, %s40, %s41
      %p45 = pneg %p39
      %p46 = scmp.eq.s32.totalorder %s18, 5
      %p47 = por %p45, %p46
      %p48 = scmp.ne.s32.totalorder %s40, %s43
      %p49 = scmp.eq.s32.totalorder %s18, 0
      %p50 = por %p48, %p49
      %p51 = scmp.ne.s32.totalorder %s40, %s43
      %p52 = scmp.eq.s32.totalorder %s23, 5
      %p53 = por %p51, %p52
      %p54 = scmp.ne.s32.totalorder %s43, %s44
      %p55 = scmp.eq.s32.totalorder %s23, 0
      %p56 = por %p54, %p55
      %p57 = scmp.ne.s32.totalorder %s43, %s44
      %p58 = scmp.eq.s32.totalorder %s24, 5
      %p59 = por %p57, %p58
      %p61 = scmp.ne.s32.totalorder %s44, %s60
      %p62 = scmp.eq.s32.totalorder %s24, 0
      %p63 = por %p61, %p62
      %s64 = ssub.s32 %s26, %s33
      %p65 = scmp.eq.s32.totalorder %s64, 0
      %s67 = sadd.s32 %s66, 1
      %s68 = scalar_select %p65, %s66, %s67
      %p71 = pneg %p65
      %p72 = scmp.eq.s32.totalorder %s18, 5
      %p73 = por %p71, %p72
      %p74 = scmp.ne.s32.totalorder %s66, %s69
      %p75 = scmp.eq.s32.totalorder %s18, 0
      %p76 = por %p74, %p75
      %p77 = scmp.ne.s32.totalorder %s66, %s69
      %p78 = scmp.eq.s32.totalorder %s23, 5
      %p79 = por %p77, %p78
      %p80 = scmp.ne.s32.totalorder %s69, %s70
      %p81 = scmp.eq.s32.totalorder %s23, 0
      %p82 = por %p80, %p81
      %p83 = scmp.ne.s32.totalorder %s69, %s70
      %p84 = scmp.eq.s32.totalorder %s24, 5
      %p85 = por %p83, %p84
      %p87 = scmp.ne.s32.totalorder %s70, %s86
      %p88 = scmp.eq.s32.totalorder %s24, 0
      %p89 = por %p87, %p88
      %s90 = ssub.s32 %s26, %s33
      %p91 = scmp.eq.s32.totalorder %s90, 0
      %s93 = sadd.s32 %s92, 1
      %s94 = scalar_select %p91, %s92, %s93
      %p97 = pneg %p91
      %p98 = scmp.eq.s32.totalorder %s18, 5
      %p99 = por %p97, %p98
      %p100 = scmp.ne.s32.totalorder %s92, %s95
      %p101 = scmp.eq.s32.totalorder %s18, 0
      %p102 = por %p100, %p101
      %p103 = scmp.ne.s32.totalorder %s92, %s95
      %p104 = scmp.eq.s32.totalorder %s23, 5
      %p105 = por %p103, %p104
      %p106 = scmp.ne.s32.totalorder %s95, %s96
      %p107 = scmp.eq.s32.totalorder %s23, 0
      %p108 = por %p106, %p107
      %p109 = scmp.ne.s32.totalorder %s95, %s96
      %p110 = scmp.eq.s32.totalorder %s24, 5
      %p111 = por %p109, %p110
      %p113 = scmp.ne.s32.totalorder %s96, %s112
      %p114 = scmp.eq.s32.totalorder %s24, 0
      %p115 = por %p113, %p114
      %s116 = ssub.s32 %s25, %s37
      %s117 = ssub.s32 %s26, %s33
      %s118 = sor.u32 %s116, %s117
      %p119 = scmp.eq.s32.totalorder %s118, 0
      %s121 = sadd.s32 %s120, 1
      %s122 = scalar_select %p119, %s120, %s121
      %p125 = pneg %p119
      %p126 = scmp.eq.s32.totalorder %s18, 5
      %p127 = por %p125, %p126
      %p128 = scmp.ne.s32.totalorder %s120, %s123
      %p129 = scmp.eq.s32.totalorder %s18, 0
      %p130 = por %p128, %p129
      %p131 = scmp.ne.s32.totalorder %s120, %s123
      %p132 = scmp.eq.s32.totalorder %s23, 5
      %p133 = por %p131, %p132
      %p134 = scmp.ne.s32.totalorder %s123, %s124
      %p135 = scmp.eq.s32.totalorder %s23, 0
      %p136 = por %p134, %p135
      %p137 = scmp.ne.s32.totalorder %s123, %s124
      %p138 = scmp.eq.s32.totalorder %s24, 5
      %p139 = por %p137, %p138
      %p141 = scmp.ne.s32.totalorder %s124, %s140
      %p142 = scmp.eq.s32.totalorder %s24, 0
      %p143 = por %p141, %p142
      %p144 = scmp.le.s32.totalorder 1, %s18
      %p145 = scmp.lt.s32.totalorder %s18, 7
      %p146 = pnand %p144, %p145
      %p147 = pneg %p146
      // Predicated region
      $region9: #{tpu_custom_call.1} parent=5 // pred_check
        _
      $region10: #{tpu_custom_call.1} parent=5 // pred_check_branch
        %149 = sbr.rel (%p146) target = $region12
      $region11: #{tpu_custom_call.1} parent=5 // pred_region
        %s150 = ssub.s32 %s18, 1
      $region12: #{tpu_custom_call.1} parent=5 // pred_fallthru
        _
      %p151 = scmp.lt.s32.totalorder %s18, 6
      // Predicated region
      $region13: #{tpu_custom_call.1} parent=5 // pred_check
        %p152 = pneg %p151
      $region14: #{tpu_custom_call.1} parent=5 // pred_check_branch
        %154 = sbr.rel (%p152) target = $region16
      $region15: #{tpu_custom_call.1} parent=5 // pred_region
        // Predicated region
        $region17: #{tpu_custom_call.1} parent=15 // pred_check
          %p155 = pneg %p50
        $region18: #{tpu_custom_call.1} parent=15 // pred_check_branch
          %157 = sbr.rel (%p155) target = $region20
        $region19: #{tpu_custom_call.1} parent=15 // pred_region
          %s158 = sand.u32 %s40, 1
          %s159 = scalar_lea.sflag [#allocation3], %s158
          %s160 = sand.u32 %s40, 1
          %s161 = smul.addr %s160, 1024
          %s162 = scalar_lea.vmem [#allocation2], %s161
          %s163 = smul.u32 32, %s25
          %s165 = ssub.s32 16384, 16384
          %166 = vsyncadd %s159, %s165
          %s167 = smul.addr %s163, 4
          %s168 = smul.addr %s167, 128
          %s169 = scalar_lea.hbm %s0, %s168
          %s170 = sshll.u32 %s162, 4
          %s171 = int_to_ptr.vmem [resolvable:$true] %s170
          %176 = dma.hbm_to_vmem [thread:$0]  %s169, 16384, %s171, %s159, 512, 512, 32
        $region20: #{tpu_custom_call.1} parent=15 // pred_fallthru
          _
        // Predicated region
        $region21: #{tpu_custom_call.1} parent=15 // pred_check
          %p177 = pneg %p76
        $region22: #{tpu_custom_call.1} parent=15 // pred_check_branch
          %179 = sbr.rel (%p177) target = $region24
        $region23: #{tpu_custom_call.1} parent=15 // pred_region
          %s180 = sand.u32 %s18, 1
          %s181 = scalar_lea.sflag [#allocation6], %s180
          %s182 = sand.u32 %s66, 1
          %s183 = smul.addr %s182, 2048
          %s184 = scalar_lea.vmem [#allocation5], %s183
          %s185 = smul.u32 4, %s26
          %s187 = ssub.s32 32768, 32768
          %188 = vsyncadd %s181, %s187
          %s189 = smul.addr %s185, 128
          %s190 = scalar_lea.hbm %s1, %s189
          %s191 = sshll.u32 %s184, 4
          %s192 = int_to_ptr.vmem [resolvable:$true] %s191
          %197 = dma.hbm_to_vmem [thread:$0]  %s190, 32768, %s192, %s181, 1536, 512, 32
        $region24: #{tpu_custom_call.1} parent=15 // pred_fallthru
          _
        // Predicated region
        $region25: #{tpu_custom_call.1} parent=15 // pred_check
          %p198 = pneg %p102
        $region26: #{tpu_custom_call.1} parent=15 // pred_check_branch
          %200 = sbr.rel (%p198) target = $region28
        $region27: #{tpu_custom_call.1} parent=15 // pred_region
          %s201 = sand.u32 %s18, 1
          %s202 = scalar_lea.sflag [#allocation6], %s201
          %s203 = sand.u32 %s92, 1
          %s204 = smul.addr %s203, 4
          %s205 = scalar_lea.vmem [#allocation7], %s204
          %s206 = smul.u32 4, %s26
          %s208 = ssub.s32 64, 64
          %209 = vsyncadd %s202, %s208
          %s210 = smul.addr %s206, 16
          %s211 = scalar_lea.hbm %s2, %s210
          %s213 = sshll.u32 %s205, 4
          %s214 = int_to_ptr.vmem [resolvable:$true] %s213
          %216 = dma.hbm_to_vmem [thread:$0]  %s211, 64, %s214, %s202
        $region28: #{tpu_custom_call.1} parent=15 // pred_fallthru
          _
      $region16: #{tpu_custom_call.1} parent=5 // pred_fallthru
        _
      %p217 = scmp.le.s32.totalorder 1, %s18
      %p218 = scmp.lt.s32.totalorder %s18, 7
      %p219 = pnand %p217, %p218
      %p220 = pneg %p219
      // Predicated region
      $region29: #{tpu_custom_call.1} parent=5 // pred_check
        _
      $region30: #{tpu_custom_call.1} parent=5 // pred_check_branch
        %222 = sbr.rel (%p219) target = $region32
      $region31: #{tpu_custom_call.1} parent=5 // pred_region
        %s223 = ssub.s32 %s18, 1
        %s224 = sand.u32 %s43, 1
        %s225 = scalar_lea.sflag [#allocation3], %s224
        %s226 = sand.u32 %s43, 1
        %s227 = smul.addr %s226, 1024
        %s228 = scalar_lea.vmem [#allocation2], %s227
        // Predicated region
        $region33: #{tpu_custom_call.1} parent=31 // pred_check
          %p229 = pneg %p56
        $region34: #{tpu_custom_call.1} parent=31 // pred_check_branch
          %231 = sbr.rel (%p229) target = $region36
        $region35: #{tpu_custom_call.1} parent=31 // pred_region
          %232 = dma.done %s225, 16384
        $region36: #{tpu_custom_call.1} parent=31 // pred_fallthru
          _
        %s233 = sand.u32 %s23, 1
        %s234 = scalar_lea.sflag [#allocation6], %s233
        %s235 = sand.u32 %s69, 1
        %s236 = smul.addr %s235, 2048
        %s237 = scalar_lea.vmem [#allocation5], %s236
        // Predicated region
        $region37: #{tpu_custom_call.1} parent=31 // pred_check
          %p238 = pneg %p82
        $region38: #{tpu_custom_call.1} parent=31 // pred_check_branch
          %240 = sbr.rel (%p238) target = $region40
        $region39: #{tpu_custom_call.1} parent=31 // pred_region
          %241 = dma.done %s234, 32768
        $region40: #{tpu_custom_call.1} parent=31 // pred_fallthru
          _
        %s242 = sand.u32 %s23, 1
        %s243 = scalar_lea.sflag [#allocation6], %s242
        %s244 = sand.u32 %s95, 1
        %s245 = smul.addr %s244, 4
        %s246 = scalar_lea.vmem [#allocation7], %s245
        // Predicated region
        $region41: #{tpu_custom_call.1} parent=31 // pred_check
          %p247 = pneg %p108
        $region42: #{tpu_custom_call.1} parent=31 // pred_check_branch
          %249 = sbr.rel (%p247) target = $region44
        $region43: #{tpu_custom_call.1} parent=31 // pred_region
          %250 = dma.done %s243, 64
        $region44: #{tpu_custom_call.1} parent=31 // pred_fallthru
          _
        %s251 = sand.u32 %s43, 1
        %s252 = scalar_lea.sflag [#allocation3], %s251
        %s253 = sand.u32 %s43, 1
        %s254 = smul.addr %s253, 1024
        %s255 = scalar_lea.vmem [#allocation2], %s254
        %p256 = pneg %p56
        %p257 = pneg %p53
        %s258 = sand.u32 %s23, 1
        %s259 = scalar_lea.sflag [#allocation6], %s258
        %s260 = sand.u32 %s69, 1
        %s261 = smul.addr %s260, 2048
        %s262 = scalar_lea.vmem [#allocation5], %s261
        %p263 = pneg %p82
        %p264 = pneg %p79
        %s265 = sand.u32 %s23, 1
        %s266 = scalar_lea.sflag [#allocation6], %s265
        %s267 = sand.u32 %s95, 1
        %s268 = smul.addr %s267, 4
        %s269 = scalar_lea.vmem [#allocation7], %s268
        %p270 = pneg %p108
        %p271 = pneg %p105
        %p272 = pneg %p136
        %p273 = pneg %p133
        %s274 = sand.u32 %s123, 1
        %s275 = scalar_lea.sflag [#allocation4], %s274
        %s276 = sand.u32 %s123, 1
        %s277 = smul.addr %s276, 1024
        %s278 = scalar_lea.vmem [#allocation8], %s277
        %s279 = smul.u32 32, %s27
        %s280 = smul.u32 4, %s28
        %s281 = smul.u32 4, %s28
        %s282 = smul.u32 32, %s27
        %s283 = smul.u32 4, %s28
        %v284 = vld [vmem:[%s228] sm:$0xff]
        %v285 = vld [vmem:[%s228 + $0x8] sm:$0xff]
        %v286 = vld [vmem:[%s228 + $0x10] sm:$0xff]
        %v287 = vld [vmem:[%s228 + $0x18] sm:$0xff]
        %v288 = vld [vmem:[%s228 + $0x20] sm:$0xff]
        %v289 = vld [vmem:[%s228 + $0x28] sm:$0xff]
        %v290 = vld [vmem:[%s228 + $0x30] sm:$0xff]
        %v291 = vld [vmem:[%s228 + $0x38] sm:$0xff]
        %v292 = vld [vmem:[%s228 + $0x40] sm:$0xff]
        %v293 = vld [vmem:[%s228 + $0x48] sm:$0xff]
        %v294 = vld [vmem:[%s228 + $0x50] sm:$0xff]
        %v295 = vld [vmem:[%s228 + $0x58] sm:$0xff]
        %v296 = vld [vmem:[%s228 + $0x60] sm:$0xff]
        %v297 = vld [vmem:[%s228 + $0x68] sm:$0xff]
        %v298 = vld [vmem:[%s228 + $0x70] sm:$0xff]
        %v299 = vld [vmem:[%s228 + $0x78] sm:$0xff]
        %v300 = vld [vmem:[%s228 + $0x80] sm:$0xff]
        %v301 = vld [vmem:[%s228 + $0x88] sm:$0xff]
        %v302 = vld [vmem:[%s228 + $0x90] sm:$0xff]
        %v303 = vld [vmem:[%s228 + $0x98] sm:$0xff]
        %v304 = vld [vmem:[%s228 + $0xa0] sm:$0xff]
        %v305 = vld [vmem:[%s228 + $0xa8] sm:$0xff]
        %v306 = vld [vmem:[%s228 + $0xb0] sm:$0xff]
        %v307 = vld [vmem:[%s228 + $0xb8] sm:$0xff]
        %v308 = vld [vmem:[%s228 + $0xc0] sm:$0xff]
        %v309 = vld [vmem:[%s228 + $0xc8] sm:$0xff]
        %v310 = vld [vmem:[%s228 + $0xd0] sm:$0xff]
        %v311 = vld [vmem:[%s228 + $0xd8] sm:$0xff]
        %v312 = vld [vmem:[%s228 + $0xe0] sm:$0xff]
        %v313 = vld [vmem:[%s228 + $0xe8] sm:$0xff]
        %v314 = vld [vmem:[%s228 + $0xf0] sm:$0xff]
        %v315 = vld [vmem:[%s228 + $0xf8] sm:$0xff]
        %v316 = vld [vmem:[%s228 + $0x100] sm:$0xff]
        %v317 = vld [vmem:[%s228 + $0x108] sm:$0xff]
        %v318 = vld [vmem:[%s228 + $0x110] sm:$0xff]
        %v319 = vld [vmem:[%s228 + $0x118] sm:$0xff]
        %v320 = vld [vmem:[%s228 + $0x120] sm:$0xff]
        %v321 = vld [vmem:[%s228 + $0x128] sm:$0xff]
        %v322 = vld [vmem:[%s228 + $0x130] sm:$0xff]
        %v323 = vld [vmem:[%s228 + $0x138] sm:$0xff]
        %v324 = vld [vmem:[%s228 + $0x140] sm:$0xff]
        %v325 = vld [vmem:[%s228 + $0x148] sm:$0xff]
        %v326 = vld [vmem:[%s228 + $0x150] sm:$0xff]
        %v327 = vld [vmem:[%s228 + $0x158] sm:$0xff]
        %v328 = vld [vmem:[%s228 + $0x160] sm:$0xff]
        %v329 = vld [vmem:[%s228 + $0x168] sm:$0xff]
        %v330 = vld [vmem:[%s228 + $0x170] sm:$0xff]
        %v331 = vld [vmem:[%s228 + $0x178] sm:$0xff]
        %v332 = vld [vmem:[%s228 + $0x180] sm:$0xff]
        %v333 = vld [vmem:[%s228 + $0x188] sm:$0xff]
        %v334 = vld [vmem:[%s228 + $0x190] sm:$0xff]
        %v335 = vld [vmem:[%s228 + $0x198] sm:$0xff]
        %v336 = vld [vmem:[%s228 + $0x1a0] sm:$0xff]
        %v337 = vld [vmem:[%s228 + $0x1a8] sm:$0xff]
        %v338 = vld [vmem:[%s228 + $0x1b0] sm:$0xff]
        %v339 = vld [vmem:[%s228 + $0x1b8] sm:$0xff]
        %v340 = vld [vmem:[%s228 + $0x1c0] sm:$0xff]
        %v341 = vld [vmem:[%s228 + $0x1c8] sm:$0xff]
        %v342 = vld [vmem:[%s228 + $0x1d0] sm:$0xff]
        %v343 = vld [vmem:[%s228 + $0x1d8] sm:$0xff]
        %v344 = vld [vmem:[%s228 + $0x1e0] sm:$0xff]
        %v345 = vld [vmem:[%s228 + $0x1e8] sm:$0xff]
        %v346 = vld [vmem:[%s228 + $0x1f0] sm:$0xff]
        %v347 = vld [vmem:[%s228 + $0x1f8] sm:$0xff]
        %v348 = vld [vmem:[%s228 + $0x200] sm:$0xff]
        %v349 = vld [vmem:[%s228 + $0x208] sm:$0xff]
        %v350 = vld [vmem:[%s228 + $0x210] sm:$0xff]
        %v351 = vld [vmem:[%s228 + $0x218] sm:$0xff]
        %v352 = vld [vmem:[%s228 + $0x220] sm:$0xff]
        %v353 = vld [vmem:[%s228 + $0x228] sm:$0xff]
        %v354 = vld [vmem:[%s228 + $0x230] sm:$0xff]
        %v355 = vld [vmem:[%s228 + $0x238] sm:$0xff]
        %v356 = vld [vmem:[%s228 + $0x240] sm:$0xff]
        %v357 = vld [vmem:[%s228 + $0x248] sm:$0xff]
        %v358 = vld [vmem:[%s228 + $0x250] sm:$0xff]
        %v359 = vld [vmem:[%s228 + $0x258] sm:$0xff]
        %v360 = vld [vmem:[%s228 + $0x260] sm:$0xff]
        %v361 = vld [vmem:[%s228 + $0x268] sm:$0xff]
        %v362 = vld [vmem:[%s228 + $0x270] sm:$0xff]
        %v363 = vld [vmem:[%s228 + $0x278] sm:$0xff]
        %v364 = vld [vmem:[%s228 + $0x280] sm:$0xff]
        %v365 = vld [vmem:[%s228 + $0x288] sm:$0xff]
        %v366 = vld [vmem:[%s228 + $0x290] sm:$0xff]
        %v367 = vld [vmem:[%s228 + $0x298] sm:$0xff]
        %v368 = vld [vmem:[%s228 + $0x2a0] sm:$0xff]
        %v369 = vld [vmem:[%s228 + $0x2a8] sm:$0xff]
        %v370 = vld [vmem:[%s228 + $0x2b0] sm:$0xff]
        %v371 = vld [vmem:[%s228 + $0x2b8] sm:$0xff]
        %v372 = vld [vmem:[%s228 + $0x2c0] sm:$0xff]
        %v373 = vld [vmem:[%s228 + $0x2c8] sm:$0xff]
        %v374 = vld [vmem:[%s228 + $0x2d0] sm:$0xff]
        %v375 = vld [vmem:[%s228 + $0x2d8] sm:$0xff]
        %v376 = vld [vmem:[%s228 + $0x2e0] sm:$0xff]
        %v377 = vld [vmem:[%s228 + $0x2e8] sm:$0xff]
        %v378 = vld [vmem:[%s228 + $0x2f0] sm:$0xff]
        %v379 = vld [vmem:[%s228 + $0x2f8] sm:$0xff]
        %v380 = vld [vmem:[%s228 + $0x300] sm:$0xff]
        %v381 = vld [vmem:[%s228 + $0x308] sm:$0xff]
        %v382 = vld [vmem:[%s228 + $0x310] sm:$0xff]
        %v383 = vld [vmem:[%s228 + $0x318] sm:$0xff]
        %v384 = vld [vmem:[%s228 + $0x320] sm:$0xff]
        %v385 = vld [vmem:[%s228 + $0x328] sm:$0xff]
        %v386 = vld [vmem:[%s228 + $0x330] sm:$0xff]
        %v387 = vld [vmem:[%s228 + $0x338] sm:$0xff]
        %v388 = vld [vmem:[%s228 + $0x340] sm:$0xff]
        %v389 = vld [vmem:[%s228 + $0x348] sm:$0xff]
        %v390 = vld [vmem:[%s228 + $0x350] sm:$0xff]
        %v391 = vld [vmem:[%s228 + $0x358] sm:$0xff]
        %v392 = vld [vmem:[%s228 + $0x360] sm:$0xff]
        %v393 = vld [vmem:[%s228 + $0x368] sm:$0xff]
        %v394 = vld [vmem:[%s228 + $0x370] sm:$0xff]
        %v395 = vld [vmem:[%s228 + $0x378] sm:$0xff]
        %v396 = vld [vmem:[%s228 + $0x380] sm:$0xff]
        %v397 = vld [vmem:[%s228 + $0x388] sm:$0xff]
        %v398 = vld [vmem:[%s228 + $0x390] sm:$0xff]
        %v399 = vld [vmem:[%s228 + $0x398] sm:$0xff]
        %v400 = vld [vmem:[%s228 + $0x3a0] sm:$0xff]
        %v401 = vld [vmem:[%s228 + $0x3a8] sm:$0xff]
        %v402 = vld [vmem:[%s228 + $0x3b0] sm:$0xff]
        %v403 = vld [vmem:[%s228 + $0x3b8] sm:$0xff]
        %v404 = vld [vmem:[%s228 + $0x3c0] sm:$0xff]
        %v405 = vld [vmem:[%s228 + $0x3c8] sm:$0xff]
        %v406 = vld [vmem:[%s228 + $0x3d0] sm:$0xff]
        %v407 = vld [vmem:[%s228 + $0x3d8] sm:$0xff]
        %v408 = vld [vmem:[%s228 + $0x3e0] sm:$0xff]
        %v409 = vld [vmem:[%s228 + $0x3e8] sm:$0xff]
        %v410 = vld [vmem:[%s228 + $0x3f0] sm:$0xff]
        %v411 = vld [vmem:[%s228 + $0x3f8] sm:$0xff]
        %v412 = vpack.c.bf16 %v288, %v284
        %v413 = vpack.c.bf16 %v289, %v285
        %v414 = vpack.c.bf16 %v290, %v286
        %v415 = vpack.c.bf16 %v291, %v287
        %v416 = vpack.c.bf16 %v296, %v292
        %v417 = vpack.c.bf16 %v297, %v293
        %v418 = vpack.c.bf16 %v298, %v294
        %v419 = vpack.c.bf16 %v299, %v295
        %v420 = vpack.c.bf16 %v304, %v300
        %v421 = vpack.c.bf16 %v305, %v301
        %v422 = vpack.c.bf16 %v306, %v302
        %v423 = vpack.c.bf16 %v307, %v303
        %v424 = vpack.c.bf16 %v312, %v308
        %v425 = vpack.c.bf16 %v313, %v309
        %v426 = vpack.c.bf16 %v314, %v310
        %v427 = vpack.c.bf16 %v315, %v311
        %v428 = vpack.c.bf16 %v320, %v316
        %v429 = vpack.c.bf16 %v321, %v317
        %v430 = vpack.c.bf16 %v322, %v318
        %v431 = vpack.c.bf16 %v323, %v319
        %v432 = vpack.c.bf16 %v328, %v324
        %v433 = vpack.c.bf16 %v329, %v325
        %v434 = vpack.c.bf16 %v330, %v326
        %v435 = vpack.c.bf16 %v331, %v327
        %v436 = vpack.c.bf16 %v336, %v332
        %v437 = vpack.c.bf16 %v337, %v333
        %v438 = vpack.c.bf16 %v338, %v334
        %v439 = vpack.c.bf16 %v339, %v335
        %v440 = vpack.c.bf16 %v344, %v340
        %v441 = vpack.c.bf16 %v345, %v341
        %v442 = vpack.c.bf16 %v346, %v342
        %v443 = vpack.c.bf16 %v347, %v343
        %v444 = vpack.c.bf16 %v352, %v348
        %v445 = vpack.c.bf16 %v353, %v349
        %v446 = vpack.c.bf16 %v354, %v350
        %v447 = vpack.c.bf16 %v355, %v351
        %v448 = vpack.c.bf16 %v360, %v356
        %v449 = vpack.c.bf16 %v361, %v357
        %v450 = vpack.c.bf16 %v362, %v358
        %v451 = vpack.c.bf16 %v363, %v359
        %v452 = vpack.c.bf16 %v368, %v364
        %v453 = vpack.c.bf16 %v369, %v365
        %v454 = vpack.c.bf16 %v370, %v366
        %v455 = vpack.c.bf16 %v371, %v367
        %v456 = vpack.c.bf16 %v376, %v372
        %v457 = vpack.c.bf16 %v377, %v373
        %v458 = vpack.c.bf16 %v378, %v374
        %v459 = vpack.c.bf16 %v379, %v375
        %v460 = vpack.c.bf16 %v384, %v380
        %v461 = vpack.c.bf16 %v385, %v381
        %v462 = vpack.c.bf16 %v386, %v382
        %v463 = vpack.c.bf16 %v387, %v383
        %v464 = vpack.c.bf16 %v392, %v388
        %v465 = vpack.c.bf16 %v393, %v389
        %v466 = vpack.c.bf16 %v394, %v390
        %v467 = vpack.c.bf16 %v395, %v391
        %v468 = vpack.c.bf16 %v400, %v396
        %v469 = vpack.c.bf16 %v401, %v397
        %v470 = vpack.c.bf16 %v402, %v398
        %v471 = vpack.c.bf16 %v403, %v399
        %v472 = vpack.c.bf16 %v408, %v404
        %v473 = vpack.c.bf16 %v409, %v405
        %v474 = vpack.c.bf16 %v410, %v406
        %v475 = vpack.c.bf16 %v411, %v407
        %v476 = vld [vmem:[%s237] sm:$0xff]
        %v477 = vld [vmem:[%s237 + $0x8] sm:$0xff]
        %v478 = vld [vmem:[%s237 + $0x10] sm:$0xff]
        %v479 = vld [vmem:[%s237 + $0x18] sm:$0xff]
        %v480 = vld [vmem:[%s237 + $0x20] sm:$0xff]
        %v481 = vld [vmem:[%s237 + $0x28] sm:$0xff]
        %v482 = vld [vmem:[%s237 + $0x30] sm:$0xff]
        %v483 = vld [vmem:[%s237 + $0x38] sm:$0xff]
        %v484 = vld [vmem:[%s237 + $0x40] sm:$0xff]
        %v485 = vld [vmem:[%s237 + $0x48] sm:$0xff]
        %v486 = vld [vmem:[%s237 + $0x50] sm:$0xff]
        %v487 = vld [vmem:[%s237 + $0x58] sm:$0xff]
        %v488 = vld [vmem:[%s237 + $0x60] sm:$0xff]
        %v489 = vld [vmem:[%s237 + $0x68] sm:$0xff]
        %v490 = vld [vmem:[%s237 + $0x70] sm:$0xff]
        %v491 = vld [vmem:[%s237 + $0x78] sm:$0xff]
        %v492 = vld [vmem:[%s237 + $0x80] sm:$0xff]
        %v493 = vld [vmem:[%s237 + $0x88] sm:$0xff]
        %v494 = vld [vmem:[%s237 + $0x90] sm:$0xff]
        %v495 = vld [vmem:[%s237 + $0x98] sm:$0xff]
        %v496 = vld [vmem:[%s237 + $0xa0] sm:$0xff]
        %v497 = vld [vmem:[%s237 + $0xa8] sm:$0xff]
        %v498 = vld [vmem:[%s237 + $0xb0] sm:$0xff]
        %v499 = vld [vmem:[%s237 + $0xb8] sm:$0xff]
        %v500 = vld [vmem:[%s237 + $0xc0] sm:$0xff]
        %v501 = vld [vmem:[%s237 + $0xc8] sm:$0xff]
        %v502 = vld [vmem:[%s237 + $0xd0] sm:$0xff]
        %v503 = vld [vmem:[%s237 + $0xd8] sm:$0xff]
        %v504 = vld [vmem:[%s237 + $0xe0] sm:$0xff]
        %v505 = vld [vmem:[%s237 + $0xe8] sm:$0xff]
        %v506 = vld [vmem:[%s237 + $0xf0] sm:$0xff]
        %v507 = vld [vmem:[%s237 + $0xf8] sm:$0xff]
        %v508 = vld [vmem:[%s237 + $0x100] sm:$0xff]
        %v509 = vld [vmem:[%s237 + $0x108] sm:$0xff]
        %v510 = vld [vmem:[%s237 + $0x110] sm:$0xff]
        %v511 = vld [vmem:[%s237 + $0x118] sm:$0xff]
        %v512 = vld [vmem:[%s237 + $0x120] sm:$0xff]
        %v513 = vld [vmem:[%s237 + $0x128] sm:$0xff]
        %v514 = vld [vmem:[%s237 + $0x130] sm:$0xff]
        %v515 = vld [vmem:[%s237 + $0x138] sm:$0xff]
        %v516 = vld [vmem:[%s237 + $0x140] sm:$0xff]
        %v517 = vld [vmem:[%s237 + $0x148] sm:$0xff]
        %v518 = vld [vmem:[%s237 + $0x150] sm:$0xff]
        %v519 = vld [vmem:[%s237 + $0x158] sm:$0xff]
        %v520 = vld [vmem:[%s237 + $0x160] sm:$0xff]
        %v521 = vld [vmem:[%s237 + $0x168] sm:$0xff]
        %v522 = vld [vmem:[%s237 + $0x170] sm:$0xff]
        %v523 = vld [vmem:[%s237 + $0x178] sm:$0xff]
        %v524 = vld [vmem:[%s237 + $0x180] sm:$0xff]
        %v525 = vld [vmem:[%s237 + $0x188] sm:$0xff]
        %v526 = vld [vmem:[%s237 + $0x190] sm:$0xff]
        %v527 = vld [vmem:[%s237 + $0x198] sm:$0xff]
        %v528 = vld [vmem:[%s237 + $0x1a0] sm:$0xff]
        %v529 = vld [vmem:[%s237 + $0x1a8] sm:$0xff]
        %v530 = vld [vmem:[%s237 + $0x1b0] sm:$0xff]
        %v531 = vld [vmem:[%s237 + $0x1b8] sm:$0xff]
        %v532 = vld [vmem:[%s237 + $0x1c0] sm:$0xff]
        %v533 = vld [vmem:[%s237 + $0x1c8] sm:$0xff]
        %v534 = vld [vmem:[%s237 + $0x1d0] sm:$0xff]
        %v535 = vld [vmem:[%s237 + $0x1d8] sm:$0xff]
        %v536 = vld [vmem:[%s237 + $0x1e0] sm:$0xff]
        %v537 = vld [vmem:[%s237 + $0x1e8] sm:$0xff]
        %v538 = vld [vmem:[%s237 + $0x1f0] sm:$0xff]
        %v539 = vld [vmem:[%s237 + $0x1f8] sm:$0xff]
        %v540 = vld [vmem:[%s237 + $0x200] sm:$0xff]
        %v541 = vld [vmem:[%s237 + $0x208] sm:$0xff]
        %v542 = vld [vmem:[%s237 + $0x210] sm:$0xff]
        %v543 = vld [vmem:[%s237 + $0x218] sm:$0xff]
        %v544 = vld [vmem:[%s237 + $0x220] sm:$0xff]
        %v545 = vld [vmem:[%s237 + $0x228] sm:$0xff]
        %v546 = vld [vmem:[%s237 + $0x230] sm:$0xff]
        %v547 = vld [vmem:[%s237 + $0x238] sm:$0xff]
        %v548 = vld [vmem:[%s237 + $0x240] sm:$0xff]
        %v549 = vld [vmem:[%s237 + $0x248] sm:$0xff]
        %v550 = vld [vmem:[%s237 + $0x250] sm:$0xff]
        %v551 = vld [vmem:[%s237 + $0x258] sm:$0xff]
        %v552 = vld [vmem:[%s237 + $0x260] sm:$0xff]
        %v553 = vld [vmem:[%s237 + $0x268] sm:$0xff]
        %v554 = vld [vmem:[%s237 + $0x270] sm:$0xff]
        %v555 = vld [vmem:[%s237 + $0x278] sm:$0xff]
        %v556 = vld [vmem:[%s237 + $0x280] sm:$0xff]
        %v557 = vld [vmem:[%s237 + $0x288] sm:$0xff]
        %v558 = vld [vmem:[%s237 + $0x290] sm:$0xff]
        %v559 = vld [vmem:[%s237 + $0x298] sm:$0xff]
        %v560 = vld [vmem:[%s237 + $0x2a0] sm:$0xff]
        %v561 = vld [vmem:[%s237 + $0x2a8] sm:$0xff]
        %v562 = vld [vmem:[%s237 + $0x2b0] sm:$0xff]
        %v563 = vld [vmem:[%s237 + $0x2b8] sm:$0xff]
        %v564 = vld [vmem:[%s237 + $0x2c0] sm:$0xff]
        %v565 = vld [vmem:[%s237 + $0x2c8] sm:$0xff]
        %v566 = vld [vmem:[%s237 + $0x2d0] sm:$0xff]
        %v567 = vld [vmem:[%s237 + $0x2d8] sm:$0xff]
        %v568 = vld [vmem:[%s237 + $0x2e0] sm:$0xff]
        %v569 = vld [vmem:[%s237 + $0x2e8] sm:$0xff]
        %v570 = vld [vmem:[%s237 + $0x2f0] sm:$0xff]
        %v571 = vld [vmem:[%s237 + $0x2f8] sm:$0xff]
        %v572 = vld [vmem:[%s237 + $0x300] sm:$0xff]
        %v573 = vld [vmem:[%s237 + $0x308] sm:$0xff]
        %v574 = vld [vmem:[%s237 + $0x310] sm:$0xff]
        %v575 = vld [vmem:[%s237 + $0x318] sm:$0xff]
        %v576 = vld [vmem:[%s237 + $0x320] sm:$0xff]
        %v577 = vld [vmem:[%s237 + $0x328] sm:$0xff]
        %v578 = vld [vmem:[%s237 + $0x330] sm:$0xff]
        %v579 = vld [vmem:[%s237 + $0x338] sm:$0xff]
        %v580 = vld [vmem:[%s237 + $0x340] sm:$0xff]
        %v581 = vld [vmem:[%s237 + $0x348] sm:$0xff]
        %v582 = vld [vmem:[%s237 + $0x350] sm:$0xff]
        %v583 = vld [vmem:[%s237 + $0x358] sm:$0xff]
        %v584 = vld [vmem:[%s237 + $0x360] sm:$0xff]
        %v585 = vld [vmem:[%s237 + $0x368] sm:$0xff]
        %v586 = vld [vmem:[%s237 + $0x370] sm:$0xff]
        %v587 = vld [vmem:[%s237 + $0x378] sm:$0xff]
        %v588 = vld [vmem:[%s237 + $0x380] sm:$0xff]
        %v589 = vld [vmem:[%s237 + $0x388] sm:$0xff]
        %v590 = vld [vmem:[%s237 + $0x390] sm:$0xff]
        %v591 = vld [vmem:[%s237 + $0x398] sm:$0xff]
        %v592 = vld [vmem:[%s237 + $0x3a0] sm:$0xff]
        %v593 = vld [vmem:[%s237 + $0x3a8] sm:$0xff]
        %v594 = vld [vmem:[%s237 + $0x3b0] sm:$0xff]
        %v595 = vld [vmem:[%s237 + $0x3b8] sm:$0xff]
        %v596 = vld [vmem:[%s237 + $0x3c0] sm:$0xff]
        %v597 = vld [vmem:[%s237 + $0x3c8] sm:$0xff]
        %v598 = vld [vmem:[%s237 + $0x3d0] sm:$0xff]
        %v599 = vld [vmem:[%s237 + $0x3d8] sm:$0xff]
        %v600 = vld [vmem:[%s237 + $0x3e0] sm:$0xff]
        %v601 = vld [vmem:[%s237 + $0x3e8] sm:$0xff]
        %v602 = vld [vmem:[%s237 + $0x3f0] sm:$0xff]
        %v603 = vld [vmem:[%s237 + $0x3f8] sm:$0xff]
        %v604 = vld [vmem:[%s237 + $0x400] sm:$0xff]
        %v605 = vld [vmem:[%s237 + $0x408] sm:$0xff]
        %v606 = vld [vmem:[%s237 + $0x410] sm:$0xff]
        %v607 = vld [vmem:[%s237 + $0x418] sm:$0xff]
        %v608 = vld [vmem:[%s237 + $0x420] sm:$0xff]
        %v609 = vld [vmem:[%s237 + $0x428] sm:$0xff]
        %v610 = vld [vmem:[%s237 + $0x430] sm:$0xff]
        %v611 = vld [vmem:[%s237 + $0x438] sm:$0xff]
        %v612 = vld [vmem:[%s237 + $0x440] sm:$0xff]
        %v613 = vld [vmem:[%s237 + $0x448] sm:$0xff]
        %v614 = vld [vmem:[%s237 + $0x450] sm:$0xff]
        %v615 = vld [vmem:[%s237 + $0x458] sm:$0xff]
        %v616 = vld [vmem:[%s237 + $0x460] sm:$0xff]
        %v617 = vld [vmem:[%s237 + $0x468] sm:$0xff]
        %v618 = vld [vmem:[%s237 + $0x470] sm:$0xff]
        %v619 = vld [vmem:[%s237 + $0x478] sm:$0xff]
        %v620 = vld [vmem:[%s237 + $0x480] sm:$0xff]
        %v621 = vld [vmem:[%s237 + $0x488] sm:$0xff]
        %v622 = vld [vmem:[%s237 + $0x490] sm:$0xff]
        %v623 = vld [vmem:[%s237 + $0x498] sm:$0xff]
        %v624 = vld [vmem:[%s237 + $0x4a0] sm:$0xff]
        %v625 = vld [vmem:[%s237 + $0x4a8] sm:$0xff]
        %v626 = vld [vmem:[%s237 + $0x4b0] sm:$0xff]
        %v627 = vld [vmem:[%s237 + $0x4b8] sm:$0xff]
        %v628 = vld [vmem:[%s237 + $0x4c0] sm:$0xff]
        %v629 = vld [vmem:[%s237 + $0x4c8] sm:$0xff]
        %v630 = vld [vmem:[%s237 + $0x4d0] sm:$0xff]
        %v631 = vld [vmem:[%s237 + $0x4d8] sm:$0xff]
        %v632 = vld [vmem:[%s237 + $0x4e0] sm:$0xff]
        %v633 = vld [vmem:[%s237 + $0x4e8] sm:$0xff]
        %v634 = vld [vmem:[%s237 + $0x4f0] sm:$0xff]
        %v635 = vld [vmem:[%s237 + $0x4f8] sm:$0xff]
        %v636 = vld [vmem:[%s237 + $0x500] sm:$0xff]
        %v637 = vld [vmem:[%s237 + $0x508] sm:$0xff]
        %v638 = vld [vmem:[%s237 + $0x510] sm:$0xff]
        %v639 = vld [vmem:[%s237 + $0x518] sm:$0xff]
        %v640 = vld [vmem:[%s237 + $0x520] sm:$0xff]
        %v641 = vld [vmem:[%s237 + $0x528] sm:$0xff]
        %v642 = vld [vmem:[%s237 + $0x530] sm:$0xff]
        %v643 = vld [vmem:[%s237 + $0x538] sm:$0xff]
        %v644 = vld [vmem:[%s237 + $0x540] sm:$0xff]
        %v645 = vld [vmem:[%s237 + $0x548] sm:$0xff]
        %v646 = vld [vmem:[%s237 + $0x550] sm:$0xff]
        %v647 = vld [vmem:[%s237 + $0x558] sm:$0xff]
        %v648 = vld [vmem:[%s237 + $0x560] sm:$0xff]
        %v649 = vld [vmem:[%s237 + $0x568] sm:$0xff]
        %v650 = vld [vmem:[%s237 + $0x570] sm:$0xff]
        %v651 = vld [vmem:[%s237 + $0x578] sm:$0xff]
        %v652 = vld [vmem:[%s237 + $0x580] sm:$0xff]
        %v653 = vld [vmem:[%s237 + $0x588] sm:$0xff]
        %v654 = vld [vmem:[%s237 + $0x590] sm:$0xff]
        %v655 = vld [vmem:[%s237 + $0x598] sm:$0xff]
        %v656 = vld [vmem:[%s237 + $0x5a0] sm:$0xff]
        %v657 = vld [vmem:[%s237 + $0x5a8] sm:$0xff]
        %v658 = vld [vmem:[%s237 + $0x5b0] sm:$0xff]
        %v659 = vld [vmem:[%s237 + $0x5b8] sm:$0xff]
        %v660 = vld [vmem:[%s237 + $0x5c0] sm:$0xff]
        %v661 = vld [vmem:[%s237 + $0x5c8] sm:$0xff]
        %v662 = vld [vmem:[%s237 + $0x5d0] sm:$0xff]
        %v663 = vld [vmem:[%s237 + $0x5d8] sm:$0xff]
        %v664 = vld [vmem:[%s237 + $0x5e0] sm:$0xff]
        %v665 = vld [vmem:[%s237 + $0x5e8] sm:$0xff]
        %v666 = vld [vmem:[%s237 + $0x5f0] sm:$0xff]
        %v667 = vld [vmem:[%s237 + $0x5f8] sm:$0xff]
        %v668 = vld [vmem:[%s237 + $0x600] sm:$0xff]
        %v669 = vld [vmem:[%s237 + $0x608] sm:$0xff]
        %v670 = vld [vmem:[%s237 + $0x610] sm:$0xff]
        %v671 = vld [vmem:[%s237 + $0x618] sm:$0xff]
        %v672 = vld [vmem:[%s237 + $0x620] sm:$0xff]
        %v673 = vld [vmem:[%s237 + $0x628] sm:$0xff]
        %v674 = vld [vmem:[%s237 + $0x630] sm:$0xff]
        %v675 = vld [vmem:[%s237 + $0x638] sm:$0xff]
        %v676 = vld [vmem:[%s237 + $0x640] sm:$0xff]
        %v677 = vld [vmem:[%s237 + $0x648] sm:$0xff]
        %v678 = vld [vmem:[%s237 + $0x650] sm:$0xff]
        %v679 = vld [vmem:[%s237 + $0x658] sm:$0xff]
        %v680 = vld [vmem:[%s237 + $0x660] sm:$0xff]
        %v681 = vld [vmem:[%s237 + $0x668] sm:$0xff]
        %v682 = vld [vmem:[%s237 + $0x670] sm:$0xff]
        %v683 = vld [vmem:[%s237 + $0x678] sm:$0xff]
        %v684 = vld [vmem:[%s237 + $0x680] sm:$0xff]
        %v685 = vld [vmem:[%s237 + $0x688] sm:$0xff]
        %v686 = vld [vmem:[%s237 + $0x690] sm:$0xff]
        %v687 = vld [vmem:[%s237 + $0x698] sm:$0xff]
        %v688 = vld [vmem:[%s237 + $0x6a0] sm:$0xff]
        %v689 = vld [vmem:[%s237 + $0x6a8] sm:$0xff]
        %v690 = vld [vmem:[%s237 + $0x6b0] sm:$0xff]
        %v691 = vld [vmem:[%s237 + $0x6b8] sm:$0xff]
        %v692 = vld [vmem:[%s237 + $0x6c0] sm:$0xff]
        %v693 = vld [vmem:[%s237 + $0x6c8] sm:$0xff]
        %v694 = vld [vmem:[%s237 + $0x6d0] sm:$0xff]
        %v695 = vld [vmem:[%s237 + $0x6d8] sm:$0xff]
        %v696 = vld [vmem:[%s237 + $0x6e0] sm:$0xff]
        %v697 = vld [vmem:[%s237 + $0x6e8] sm:$0xff]
        %v698 = vld [vmem:[%s237 + $0x6f0] sm:$0xff]
        %v699 = vld [vmem:[%s237 + $0x6f8] sm:$0xff]
        %v700 = vld [vmem:[%s237 + $0x700] sm:$0xff]
        %v701 = vld [vmem:[%s237 + $0x708] sm:$0xff]
        %v702 = vld [vmem:[%s237 + $0x710] sm:$0xff]
        %v703 = vld [vmem:[%s237 + $0x718] sm:$0xff]
        %v704 = vld [vmem:[%s237 + $0x720] sm:$0xff]
        %v705 = vld [vmem:[%s237 + $0x728] sm:$0xff]
        %v706 = vld [vmem:[%s237 + $0x730] sm:$0xff]
        %v707 = vld [vmem:[%s237 + $0x738] sm:$0xff]
        %v708 = vld [vmem:[%s237 + $0x740] sm:$0xff]
        %v709 = vld [vmem:[%s237 + $0x748] sm:$0xff]
        %v710 = vld [vmem:[%s237 + $0x750] sm:$0xff]
        %v711 = vld [vmem:[%s237 + $0x758] sm:$0xff]
        %v712 = vld [vmem:[%s237 + $0x760] sm:$0xff]
        %v713 = vld [vmem:[%s237 + $0x768] sm:$0xff]
        %v714 = vld [vmem:[%s237 + $0x770] sm:$0xff]
        %v715 = vld [vmem:[%s237 + $0x778] sm:$0xff]
        %v716 = vld [vmem:[%s237 + $0x780] sm:$0xff]
        %v717 = vld [vmem:[%s237 + $0x788] sm:$0xff]
        %v718 = vld [vmem:[%s237 + $0x790] sm:$0xff]
        %v719 = vld [vmem:[%s237 + $0x798] sm:$0xff]
        %v720 = vld [vmem:[%s237 + $0x7a0] sm:$0xff]
        %v721 = vld [vmem:[%s237 + $0x7a8] sm:$0xff]
        %v722 = vld [vmem:[%s237 + $0x7b0] sm:$0xff]
        %v723 = vld [vmem:[%s237 + $0x7b8] sm:$0xff]
        %v724 = vld [vmem:[%s237 + $0x7c0] sm:$0xff]
        %v725 = vld [vmem:[%s237 + $0x7c8] sm:$0xff]
        %v726 = vld [vmem:[%s237 + $0x7d0] sm:$0xff]
        %v727 = vld [vmem:[%s237 + $0x7d8] sm:$0xff]
        %v728 = vld [vmem:[%s237 + $0x7e0] sm:$0xff]
        %v729 = vld [vmem:[%s237 + $0x7e8] sm:$0xff]
        %v730 = vld [vmem:[%s237 + $0x7f0] sm:$0xff]
        %v731 = vld [vmem:[%s237 + $0x7f8] sm:$0xff]
        %v732 = vpack.c.bf16 %v480, %v476
        %v733 = vpack.c.bf16 %v481, %v477
        %v734 = vpack.c.bf16 %v482, %v478
        %v735 = vpack.c.bf16 %v483, %v479
        %v736 = vpack.c.bf16 %v488, %v484
        %v737 = vpack.c.bf16 %v489, %v485
        %v738 = vpack.c.bf16 %v490, %v486
        %v739 = vpack.c.bf16 %v491, %v487
        %v740 = vpack.c.bf16 %v496, %v492
        %v741 = vpack.c.bf16 %v497, %v493
        %v742 = vpack.c.bf16 %v498, %v494
        %v743 = vpack.c.bf16 %v499, %v495
        %v744 = vpack.c.bf16 %v504, %v500
        %v745 = vpack.c.bf16 %v505, %v501
        %v746 = vpack.c.bf16 %v506, %v502
        %v747 = vpack.c.bf16 %v507, %v503
        %v748 = vpack.c.bf16 %v512, %v508
        %v749 = vpack.c.bf16 %v513, %v509
        %v750 = vpack.c.bf16 %v514, %v510
        %v751 = vpack.c.bf16 %v515, %v511
        %v752 = vpack.c.bf16 %v520, %v516
        %v753 = vpack.c.bf16 %v521, %v517
        %v754 = vpack.c.bf16 %v522, %v518
        %v755 = vpack.c.bf16 %v523, %v519
        %v756 = vpack.c.bf16 %v528, %v524
        %v757 = vpack.c.bf16 %v529, %v525
        %v758 = vpack.c.bf16 %v530, %v526
        %v759 = vpack.c.bf16 %v531, %v527
        %v760 = vpack.c.bf16 %v536, %v532
        %v761 = vpack.c.bf16 %v537, %v533
        %v762 = vpack.c.bf16 %v538, %v534
        %v763 = vpack.c.bf16 %v539, %v535
        %v764 = vpack.c.bf16 %v544, %v540
        %v765 = vpack.c.bf16 %v545, %v541
        %v766 = vpack.c.bf16 %v546, %v542
        %v767 = vpack.c.bf16 %v547, %v543
        %v768 = vpack.c.bf16 %v552, %v548
        %v769 = vpack.c.bf16 %v553, %v549
        %v770 = vpack.c.bf16 %v554, %v550
        %v771 = vpack.c.bf16 %v555, %v551
        %v772 = vpack.c.bf16 %v560, %v556
        %v773 = vpack.c.bf16 %v561, %v557
        %v774 = vpack.c.bf16 %v562, %v558
        %v775 = vpack.c.bf16 %v563, %v559
        %v776 = vpack.c.bf16 %v568, %v564
        %v777 = vpack.c.bf16 %v569, %v565
        %v778 = vpack.c.bf16 %v570, %v566
        %v779 = vpack.c.bf16 %v571, %v567
        %v780 = vpack.c.bf16 %v576, %v572
        %v781 = vpack.c.bf16 %v577, %v573
        %v782 = vpack.c.bf16 %v578, %v574
        %v783 = vpack.c.bf16 %v579, %v575
        %v784 = vpack.c.bf16 %v584, %v580
        %v785 = vpack.c.bf16 %v585, %v581
        %v786 = vpack.c.bf16 %v586, %v582
        %v787 = vpack.c.bf16 %v587, %v583
        %v788 = vpack.c.bf16 %v592, %v588
        %v789 = vpack.c.bf16 %v593, %v589
        %v790 = vpack.c.bf16 %v594, %v590
        %v791 = vpack.c.bf16 %v595, %v591
        %v792 = vpack.c.bf16 %v600, %v596
        %v793 = vpack.c.bf16 %v601, %v597
        %v794 = vpack.c.bf16 %v602, %v598
        %v795 = vpack.c.bf16 %v603, %v599
        %v796 = vpack.c.bf16 %v608, %v604
        %v797 = vpack.c.bf16 %v609, %v605
        %v798 = vpack.c.bf16 %v610, %v606
        %v799 = vpack.c.bf16 %v611, %v607
        %v800 = vpack.c.bf16 %v616, %v612
        %v801 = vpack.c.bf16 %v617, %v613
        %v802 = vpack.c.bf16 %v618, %v614
        %v803 = vpack.c.bf16 %v619, %v615
        %v804 = vpack.c.bf16 %v624, %v620
        %v805 = vpack.c.bf16 %v625, %v621
        %v806 = vpack.c.bf16 %v626, %v622
        %v807 = vpack.c.bf16 %v627, %v623
        %v808 = vpack.c.bf16 %v632, %v628
        %v809 = vpack.c.bf16 %v633, %v629
        %v810 = vpack.c.bf16 %v634, %v630
        %v811 = vpack.c.bf16 %v635, %v631
        %v812 = vpack.c.bf16 %v640, %v636
        %v813 = vpack.c.bf16 %v641, %v637
        %v814 = vpack.c.bf16 %v642, %v638
        %v815 = vpack.c.bf16 %v643, %v639
        %v816 = vpack.c.bf16 %v648, %v644
        %v817 = vpack.c.bf16 %v649, %v645
        %v818 = vpack.c.bf16 %v650, %v646
        %v819 = vpack.c.bf16 %v651, %v647
        %v820 = vpack.c.bf16 %v656, %v652
        %v821 = vpack.c.bf16 %v657, %v653
        %v822 = vpack.c.bf16 %v658, %v654
        %v823 = vpack.c.bf16 %v659, %v655
        %v824 = vpack.c.bf16 %v664, %v660
        %v825 = vpack.c.bf16 %v665, %v661
        %v826 = vpack.c.bf16 %v666, %v662
        %v827 = vpack.c.bf16 %v667, %v663
        %v828 = vpack.c.bf16 %v672, %v668
        %v829 = vpack.c.bf16 %v673, %v669
        %v830 = vpack.c.bf16 %v674, %v670
        %v831 = vpack.c.bf16 %v675, %v671
        %v832 = vpack.c.bf16 %v680, %v676
        %v833 = vpack.c.bf16 %v681, %v677
        %v834 = vpack.c.bf16 %v682, %v678
        %v835 = vpack.c.bf16 %v683, %v679
        %v836 = vpack.c.bf16 %v688, %v684
        %v837 = vpack.c.bf16 %v689, %v685
        %v838 = vpack.c.bf16 %v690, %v686
        %v839 = vpack.c.bf16 %v691, %v687
        %v840 = vpack.c.bf16 %v696, %v692
        %v841 = vpack.c.bf16 %v697, %v693
        %v842 = vpack.c.bf16 %v698, %v694
        %v843 = vpack.c.bf16 %v699, %v695
        %v844 = vpack.c.bf16 %v704, %v700
        %v845 = vpack.c.bf16 %v705, %v701
        %v846 = vpack.c.bf16 %v706, %v702
        %v847 = vpack.c.bf16 %v707, %v703
        %v848 = vpack.c.bf16 %v712, %v708
        %v849 = vpack.c.bf16 %v713, %v709
        %v850 = vpack.c.bf16 %v714, %v710
        %v851 = vpack.c.bf16 %v715, %v711
        %v852 = vpack.c.bf16 %v720, %v716
        %v853 = vpack.c.bf16 %v721, %v717
        %v854 = vpack.c.bf16 %v722, %v718
        %v855 = vpack.c.bf16 %v723, %v719
        %v856 = vpack.c.bf16 %v728, %v724
        %v857 = vpack.c.bf16 %v729, %v725
        %v858 = vpack.c.bf16 %v730, %v726
        %v859 = vpack.c.bf16 %v731, %v727
        %v860 = vld [vmem:[%s246] sm:$0xf]
        %v862 = vlaneseq
        %v863 = vshrl.u32 %v862, 7
        %v864 = vsub.s32 0, %v863
        %v865 = vrot.slane %v860, %v864
        %v866 = vlaneseq
        %v867 = vshrl.u32 %v866, 7
        %v868 = vsub.s32 1, %v867
        %v869 = vrot.slane %v860, %v868
        %v870 = vlaneseq
        %v871 = vshrl.u32 %v870, 7
        %v872 = vsub.s32 2, %v871
        %v873 = vrot.slane %v860, %v872
        %v874 = vlaneseq
        %v875 = vshrl.u32 %v874, 7
        %v876 = vsub.s32 3, %v875
        %v877 = vrot.slane %v860, %v876
        %882 = vmatprep.subr.bf16.mxu0 %v733
        %883 = vmatpush1.bf16.msra.mxu0 %v732
        %884 = vmatprep.subr.bf16.mxu0 %v737
        %885 = vmatpush1.bf16.msra.mxu0 %v736
        %886 = vmatprep.subr.bf16.mxu0 %v741
        %887 = vmatpush1.bf16.msra.mxu0 %v740
        %888 = vmatprep.subr.bf16.mxu0 %v745
        %889 = vmatpush1.bf16.msra.mxu0 %v744
        %890 = vmatprep.subr.bf16.mxu0 %v749
        %891 = vmatpush1.bf16.msra.mxu0 %v748
        %892 = vmatprep.subr.bf16.mxu0 %v753
        %893 = vmatpush1.bf16.msra.mxu0 %v752
        %894 = vmatprep.subr.bf16.mxu0 %v757
        %895 = vmatpush1.bf16.msra.mxu0 %v756
        %896 = vmatprep.subr.bf16.mxu0 %v761
        %897 = vmatpush1.bf16.msra.mxu0 %v760
        %898 = vmatprep.subr.bf16.mxu0 %v765
        %899 = vmatpush1.bf16.msra.mxu0 %v764
        %900 = vmatprep.subr.bf16.mxu0 %v769
        %901 = vmatpush1.bf16.msra.mxu0 %v768
        %902 = vmatprep.subr.bf16.mxu0 %v773
        %903 = vmatpush1.bf16.msra.mxu0 %v772
        %904 = vmatprep.subr.bf16.mxu0 %v777
        %905 = vmatpush1.bf16.msra.mxu0 %v776
        %906 = vmatprep.subr.bf16.mxu0 %v781
        %907 = vmatpush1.bf16.msra.mxu0 %v780
        %908 = vmatprep.subr.bf16.mxu0 %v785
        %909 = vmatpush1.bf16.msra.mxu0 %v784
        %910 = vmatprep.subr.bf16.mxu0 %v789
        %911 = vmatpush1.bf16.msra.mxu0 %v788
        %912 = vmatprep.subr.bf16.mxu0 %v793
        %913 = vmatpush1.bf16.msra.mxu0 %v792
        %914 = vmatprep.mubr.bf16.mxu0 %v413
        %915 = vmatmul.mubr.bf16.gmra.mrb[0].mxu0 %v412
        %v916 = vpop.f32.mrb[0].mxu0
        %v917 = vadd.f32 %v865, %v916
        %v918 = vpop.f32.mrb[0].mxu0
        %v919 = vadd.f32 %v869, %v918
        %v920 = vpop.f32.mrb[0].mxu0
        %v921 = vadd.f32 %v865, %v920
        %v922 = vpop.f32.mrb[0].mxu0
        %v923 = vadd.f32 %v869, %v922
        %924 = vmatprep.mubr.bf16.mxu0 %v417
        %925 = vmatmul.mubr.bf16.gmra.mrb[0].mxu0 %v416
        %v926 = vpop.f32.mrb[0].mxu0
        %v927 = vadd.f32 %v865, %v926
        %v928 = vpop.f32.mrb[0].mxu0
        %v929 = vadd.f32 %v869, %v928
        %v930 = vpop.f32.mrb[0].mxu0
        %v931 = vadd.f32 %v865, %v930
        %v932 = vpop.f32.mrb[0].mxu0
        %v933 = vadd.f32 %v869, %v932
        %934 = vmatprep.mubr.bf16.mxu0 %v421
        %935 = vmatmul.mubr.bf16.gmra.mrb[0].mxu0 %v420
        %v936 = vpop.f32.mrb[0].mxu0
        %v937 = vadd.f32 %v865, %v936
        %v938 = vpop.f32.mrb[0].mxu0
        %v939 = vadd.f32 %v869, %v938
        %v940 = vpop.f32.mrb[0].mxu0
        %v941 = vadd.f32 %v865, %v940
        %v942 = vpop.f32.mrb[0].mxu0
        %v943 = vadd.f32 %v869, %v942
        %944 = vmatprep.mubr.bf16.mxu0 %v425
        %945 = vmatmul.mubr.bf16.gmra.mrb[0].mxu0 %v424
        %v946 = vpop.f32.mrb[0].mxu0
        %v947 = vadd.f32 %v865, %v946
        %v948 = vpop.f32.mrb[0].mxu0
        %v949 = vadd.f32 %v869, %v948
        %v950 = vpop.f32.mrb[0].mxu0
        %v951 = vadd.f32 %v865, %v950
        %v952 = vpop.f32.mrb[0].mxu0
        %v953 = vadd.f32 %v869, %v952
        %954 = vmatprep.mubr.bf16.mxu0 %v429
        %955 = vmatmul.mubr.bf16.gmra.mrb[0].mxu0 %v428
        %v956 = vpop.f32.mrb[0].mxu0
        %v957 = vadd.f32 %v865, %v956
        %v958 = vpop.f32.mrb[0].mxu0
        %v959 = vadd.f32 %v869, %v958
        %v960 = vpop.f32.mrb[0].mxu0
        %v961 = vadd.f32 %v865, %v960
        %v962 = vpop.f32.mrb[0].mxu0
        %v963 = vadd.f32 %v869, %v962
        %964 = vmatprep.mubr.bf16.mxu0 %v433
        %965 = vmatmul.mubr.bf16.gmra.mrb[0].mxu0 %v432
        %v966 = vpop.f32.mrb[0].mxu0
        %v967 = vadd.f32 %v865, %v966
        %v968 = vpop.f32.mrb[0].mxu0
        %v969 = vadd.f32 %v869, %v968
        %v970 = vpop.f32.mrb[0].mxu0
        %v971 = vadd.f32 %v865, %v970
        %v972 = vpop.f32.mrb[0].mxu0
        %v973 = vadd.f32 %v869, %v972
        %974 = vmatprep.mubr.bf16.mxu0 %v437
        %975 = vmatmul.mubr.bf16.gmra.mrb[0].mxu0 %v436
        %v976 = vpop.f32.mrb[0].mxu0
        %v977 = vadd.f32 %v865, %v976
        %v978 = vpop.f32.mrb[0].mxu0
        %v979 = vadd.f32 %v869, %v978
        %v980 = vpop.f32.mrb[0].mxu0
        %v981 = vadd.f32 %v865, %v980
        %v982 = vpop.f32.mrb[0].mxu0
        %v983 = vadd.f32 %v869, %v982
        %984 = vmatprep.mubr.bf16.mxu0 %v441
        %985 = vmatmul.mubr.bf16.gmra.mrb[0].mxu0 %v440
        %v986 = vpop.f32.mrb[0].mxu0
        %v987 = vadd.f32 %v865, %v986
        %v988 = vpop.f32.mrb[0].mxu0
        %v989 = vadd.f32 %v869, %v988
        %v990 = vpop.f32.mrb[0].mxu0
        %v991 = vadd.f32 %v865, %v990
        %v992 = vpop.f32.mrb[0].mxu0
        %v993 = vadd.f32 %v869, %v992
        %994 = vmatprep.mubr.bf16.mxu0 %v445
        %995 = vmatmul.mubr.bf16.gmra.mrb[0].mxu0 %v444
        %v996 = vpop.f32.mrb[0].mxu0
        %v997 = vadd.f32 %v865, %v996
        %v998 = vpop.f32.mrb[0].mxu0
        %v999 = vadd.f32 %v869, %v998
        %v1000 = vpop.f32.mrb[0].mxu0
        %v1001 = vadd.f32 %v865, %v1000
        %v1002 = vpop.f32.mrb[0].mxu0
        %v1003 = vadd.f32 %v869, %v1002
        %1004 = vmatprep.mubr.bf16.mxu0 %v449
        %1005 = vmatmul.mubr.bf16.gmra.mrb[0].mxu0 %v448
        %v1006 = vpop.f32.mrb[0].mxu0
        %v1007 = vadd.f32 %v865, %v1006
        %v1008 = vpop.f32.mrb[0].mxu0
        %v1009 = vadd.f32 %v869, %v1008
        %v1010 = vpop.f32.mrb[0].mxu0
        %v1011 = vadd.f32 %v865, %v1010
        %v1012 = vpop.f32.mrb[0].mxu0
        %v1013 = vadd.f32 %v869, %v1012
        %1014 = vmatprep.mubr.bf16.mxu0 %v453
        %1015 = vmatmul.mubr.bf16.gmra.mrb[0].mxu0 %v452
        %v1016 = vpop.f32.mrb[0].mxu0
        %v1017 = vadd.f32 %v865, %v1016
        %v1018 = vpop.f32.mrb[0].mxu0
        %v1019 = vadd.f32 %v869, %v1018
        %v1020 = vpop.f32.mrb[0].mxu0
        %v1021 = vadd.f32 %v865, %v1020
        %v1022 = vpop.f32.mrb[0].mxu0
        %v1023 = vadd.f32 %v869, %v1022
        %1024 = vmatprep.mubr.bf16.mxu0 %v457
        %1025 = vmatmul.mubr.bf16.gmra.mrb[0].mxu0 %v456
        %v1026 = vpop.f32.mrb[0].mxu0
        %v1027 = vadd.f32 %v865, %v1026
        %v1028 = vpop.f32.mrb[0].mxu0
        %v1029 = vadd.f32 %v869, %v1028
        %v1030 = vpop.f32.mrb[0].mxu0
        %v1031 = vadd.f32 %v865, %v1030
        %v1032 = vpop.f32.mrb[0].mxu0
        %v1033 = vadd.f32 %v869, %v1032
        %1034 = vmatprep.mubr.bf16.mxu0 %v461
        %1035 = vmatmul.mubr.bf16.gmra.mrb[0].mxu0 %v460
        %v1036 = vpop.f32.mrb[0].mxu0
        %v1037 = vadd.f32 %v865, %v1036
        %v1038 = vpop.f32.mrb[0].mxu0
        %v1039 = vadd.f32 %v869, %v1038
        %v1040 = vpop.f32.mrb[0].mxu0
        %v1041 = vadd.f32 %v865, %v1040
        %v1042 = vpop.f32.mrb[0].mxu0
        %v1043 = vadd.f32 %v869, %v1042
        %1044 = vmatprep.mubr.bf16.mxu0 %v465
        %1045 = vmatmul.mubr.bf16.gmra.mrb[0].mxu0 %v464
        %v1046 = vpop.f32.mrb[0].mxu0
        %v1047 = vadd.f32 %v865, %v1046
        %v1048 = vpop.f32.mrb[0].mxu0
        %v1049 = vadd.f32 %v869, %v1048
        %v1050 = vpop.f32.mrb[0].mxu0
        %v1051 = vadd.f32 %v865, %v1050
        %v1052 = vpop.f32.mrb[0].mxu0
        %v1053 = vadd.f32 %v869, %v1052
        %1054 = vmatprep.mubr.bf16.mxu0 %v469
        %1055 = vmatmul.mubr.bf16.gmra.mrb[0].mxu0 %v468
        %v1056 = vpop.f32.mrb[0].mxu0
        %v1057 = vadd.f32 %v865, %v1056
        %v1058 = vpop.f32.mrb[0].mxu0
        %v1059 = vadd.f32 %v869, %v1058
        %v1060 = vpop.f32.mrb[0].mxu0
        %v1061 = vadd.f32 %v865, %v1060
        %v1062 = vpop.f32.mrb[0].mxu0
        %v1063 = vadd.f32 %v869, %v1062
        %1064 = vmatprep.mubr.bf16.mxu0 %v473
        %1065 = vmatmul.mubr.bf16.gmra.mrb[0].mxu0 %v472
        %v1066 = vpop.f32.mrb[0].mxu0
        %v1067 = vadd.f32 %v865, %v1066
        %v1068 = vpop.f32.mrb[0].mxu0
        %v1069 = vadd.f32 %v869, %v1068
        %v1070 = vpop.f32.mrb[0].mxu0
        %v1071 = vadd.f32 %v865, %v1070
        %v1072 = vpop.f32.mrb[0].mxu0
        %v1073 = vadd.f32 %v869, %v1072
        %1074 = vdwg.mxu0
        %1075 = vmatprep.subr.bf16.mxu0 %v797
        %1076 = vmatpush1.bf16.msra.mxu0 %v796
        %1077 = vmatprep.subr.bf16.mxu0 %v801
        %1078 = vmatpush1.bf16.msra.mxu0 %v800
        %1079 = vmatprep.subr.bf16.mxu0 %v805
        %1080 = vmatpush1.bf16.msra.mxu0 %v804
        %1081 = vmatprep.subr.bf16.mxu0 %v809
        %1082 = vmatpush1.bf16.msra.mxu0 %v808
        %1083 = vmatprep.subr.bf16.mxu0 %v813
        %1084 = vmatpush1.bf16.msra.mxu0 %v812
        %1085 = vmatprep.subr.bf16.mxu0 %v817
        %1086 = vmatpush1.bf16.msra.mxu0 %v816
        %1087 = vmatprep.subr.bf16.mxu0 %v821
        %1088 = vmatpush1.bf16.msra.mxu0 %v820
        %1089 = vmatprep.subr.bf16.mxu0 %v825
        %1090 = vmatpush1.bf16.msra.mxu0 %v824
        %1091 = vmatprep.subr.bf16.mxu0 %v829
        %1092 = vmatpush1.bf16.msra.mxu0 %v828
        %1093 = vmatprep.subr.bf16.mxu0 %v833
        %1094 = vmatpush1.bf16.msra.mxu0 %v832
        %1095 = vmatprep.subr.bf16.mxu0 %v837
        %1096 = vmatpush1.bf16.msra.mxu0 %v836
        %1097 = vmatprep.subr.bf16.mxu0 %v841
        %1098 = vmatpush1.bf16.msra.mxu0 %v840
        %1099 = vmatprep.subr.bf16.mxu0 %v845
        %1100 = vmatpush1.bf16.msra.mxu0 %v844
        %1101 = vmatprep.subr.bf16.mxu0 %v849
        %1102 = vmatpush1.bf16.msra.mxu0 %v848
        %1103 = vmatprep.subr.bf16.mxu0 %v853
        %1104 = vmatpush1.bf16.msra.mxu0 %v852
        %1105 = vmatprep.subr.bf16.mxu0 %v857
        %1106 = vmatpush1.bf16.msra.mxu0 %v856
        %1107 = vmatprep.mubr.bf16.mxu0 %v415
        %1108 = vmatmul.mubr.bf16.gmra.mrb[0].mxu0 %v414
        %v1109 = vpop.f32.mrb[0].mxu0
        %v1110 = vadd.f32 %v917, %v1109
        %v1111 = vpop.f32.mrb[0].mxu0
        %v1112 = vadd.f32 %v919, %v1111
        %v1113 = vpop.f32.mrb[0].mxu0
        %v1114 = vadd.f32 %v921, %v1113
        %v1115 = vpop.f32.mrb[0].mxu0
        %v1116 = vadd.f32 %v923, %v1115
        %1117 = vmatprep.mubr.bf16.mxu0 %v419
        %1118 = vmatmul.mubr.bf16.gmra.mrb[0].mxu0 %v418
        %v1119 = vpop.f32.mrb[0].mxu0
        %v1120 = vadd.f32 %v927, %v1119
        %v1121 = vpop.f32.mrb[0].mxu0
        %v1122 = vadd.f32 %v929, %v1121
        %v1123 = vpop.f32.mrb[0].mxu0
        %v1124 = vadd.f32 %v931, %v1123
        %v1125 = vpop.f32.mrb[0].mxu0
        %v1126 = vadd.f32 %v933, %v1125
        %1127 = vmatprep.mubr.bf16.mxu0 %v423
        %1128 = vmatmul.mubr.bf16.gmra.mrb[0].mxu0 %v422
        %v1129 = vpop.f32.mrb[0].mxu0
        %v1130 = vadd.f32 %v937, %v1129
        %v1131 = vpop.f32.mrb[0].mxu0
        %v1132 = vadd.f32 %v939, %v1131
        %v1133 = vpop.f32.mrb[0].mxu0
        %v1134 = vadd.f32 %v941, %v1133
        %v1135 = vpop.f32.mrb[0].mxu0
        %v1136 = vadd.f32 %v943, %v1135
        %1137 = vmatprep.mubr.bf16.mxu0 %v427
        %1138 = vmatmul.mubr.bf16.gmra.mrb[0].mxu0 %v426
        %v1139 = vpop.f32.mrb[0].mxu0
        %v1140 = vadd.f32 %v947, %v1139
        %v1141 = vpop.f32.mrb[0].mxu0
        %v1142 = vadd.f32 %v949, %v1141
        %v1143 = vpop.f32.mrb[0].mxu0
        %v1144 = vadd.f32 %v951, %v1143
        %v1145 = vpop.f32.mrb[0].mxu0
        %v1146 = vadd.f32 %v953, %v1145
        %1147 = vmatprep.mubr.bf16.mxu0 %v431
        %1148 = vmatmul.mubr.bf16.gmra.mrb[0].mxu0 %v430
        %v1149 = vpop.f32.mrb[0].mxu0
        %v1150 = vadd.f32 %v957, %v1149
        %v1151 = vpop.f32.mrb[0].mxu0
        %v1152 = vadd.f32 %v959, %v1151
        %v1153 = vpop.f32.mrb[0].mxu0
        %v1154 = vadd.f32 %v961, %v1153
        %v1155 = vpop.f32.mrb[0].mxu0
        %v1156 = vadd.f32 %v963, %v1155
        %1157 = vmatprep.mubr.bf16.mxu0 %v435
        %1158 = vmatmul.mubr.bf16.gmra.mrb[0].mxu0 %v434
        %v1159 = vpop.f32.mrb[0].mxu0
        %v1160 = vadd.f32 %v967, %v1159
        %v1161 = vpop.f32.mrb[0].mxu0
        %v1162 = vadd.f32 %v969, %v1161
        %v1163 = vpop.f32.mrb[0].mxu0
        %v1164 = vadd.f32 %v971, %v1163
        %v1165 = vpop.f32.mrb[0].mxu0
        %v1166 = vadd.f32 %v973, %v1165
        %1167 = vmatprep.mubr.bf16.mxu0 %v439
        %1168 = vmatmul.mubr.bf16.gmra.mrb[0].mxu0 %v438
        %v1169 = vpop.f32.mrb[0].mxu0
        %v1170 = vadd.f32 %v977, %v1169
        %v1171 = vpop.f32.mrb[0].mxu0
        %v1172 = vadd.f32 %v979, %v1171
        %v1173 = vpop.f32.mrb[0].mxu0
        %v1174 = vadd.f32 %v981, %v1173
        %v1175 = vpop.f32.mrb[0].mxu0
        %v1176 = vadd.f32 %v983, %v1175
        %1177 = vmatprep.mubr.bf16.mxu0 %v443
        %1178 = vmatmul.mubr.bf16.gmra.mrb[0].mxu0 %v442
        %v1179 = vpop.f32.mrb[0].mxu0
        %v1180 = vadd.f32 %v987, %v1179
        %v1181 = vpop.f32.mrb[0].mxu0
        %v1182 = vadd.f32 %v989, %v1181
        %v1183 = vpop.f32.mrb[0].mxu0
        %v1184 = vadd.f32 %v991, %v1183
        %v1185 = vpop.f32.mrb[0].mxu0
        %v1186 = vadd.f32 %v993, %v1185
        %1187 = vmatprep.mubr.bf16.mxu0 %v447
        %1188 = vmatmul.mubr.bf16.gmra.mrb[0].mxu0 %v446
        %v1189 = vpop.f32.mrb[0].mxu0
        %v1190 = vadd.f32 %v997, %v1189
        %v1191 = vpop.f32.mrb[0].mxu0
        %v1192 = vadd.f32 %v999, %v1191
        %v1193 = vpop.f32.mrb[0].mxu0
        %v1194 = vadd.f32 %v1001, %v1193
        %v1195 = vpop.f32.mrb[0].mxu0
        %v1196 = vadd.f32 %v1003, %v1195
        %1197 = vmatprep.mubr.bf16.mxu0 %v451
        %1198 = vmatmul.mubr.bf16.gmra.mrb[0].mxu0 %v450
        %v1199 = vpop.f32.mrb[0].mxu0
        %v1200 = vadd.f32 %v1007, %v1199
        %v1201 = vpop.f32.mrb[0].mxu0
        %v1202 = vadd.f32 %v1009, %v1201
        %v1203 = vpop.f32.mrb[0].mxu0
        %v1204 = vadd.f32 %v1011, %v1203
        %v1205 = vpop.f32.mrb[0].mxu0
        %v1206 = vadd.f32 %v1013, %v1205
        %1207 = vmatprep.mubr.bf16.mxu0 %v455
        %1208 = vmatmul.mubr.bf16.gmra.mrb[0].mxu0 %v454
        %v1209 = vpop.f32.mrb[0].mxu0
        %v1210 = vadd.f32 %v1017, %v1209
        %v1211 = vpop.f32.mrb[0].mxu0
        %v1212 = vadd.f32 %v1019, %v1211
        %v1213 = vpop.f32.mrb[0].mxu0
        %v1214 = vadd.f32 %v1021, %v1213
        %v1215 = vpop.f32.mrb[0].mxu0
        %v1216 = vadd.f32 %v1023, %v1215
        %1217 = vmatprep.mubr.bf16.mxu0 %v459
        %1218 = vmatmul.mubr.bf16.gmra.mrb[0].mxu0 %v458
        %v1219 = vpop.f32.mrb[0].mxu0
        %v1220 = vadd.f32 %v1027, %v1219
        %v1221 = vpop.f32.mrb[0].mxu0
        %v1222 = vadd.f32 %v1029, %v1221
        %v1223 = vpop.f32.mrb[0].mxu0
        %v1224 = vadd.f32 %v1031, %v1223
        %v1225 = vpop.f32.mrb[0].mxu0
        %v1226 = vadd.f32 %v1033, %v1225
        %1227 = vmatprep.mubr.bf16.mxu0 %v463
        %1228 = vmatmul.mubr.bf16.gmra.mrb[0].mxu0 %v462
        %v1229 = vpop.f32.mrb[0].mxu0
        %v1230 = vadd.f32 %v1037, %v1229
        %v1231 = vpop.f32.mrb[0].mxu0
        %v1232 = vadd.f32 %v1039, %v1231
        %v1233 = vpop.f32.mrb[0].mxu0
        %v1234 = vadd.f32 %v1041, %v1233
        %v1235 = vpop.f32.mrb[0].mxu0
        %v1236 = vadd.f32 %v1043, %v1235
        %1237 = vmatprep.mubr.bf16.mxu0 %v467
        %1238 = vmatmul.mubr.bf16.gmra.mrb[0].mxu0 %v466
        %v1239 = vpop.f32.mrb[0].mxu0
        %v1240 = vadd.f32 %v1047, %v1239
        %v1241 = vpop.f32.mrb[0].mxu0
        %v1242 = vadd.f32 %v1049, %v1241
        %v1243 = vpop.f32.mrb[0].mxu0
        %v1244 = vadd.f32 %v1051, %v1243
        %v1245 = vpop.f32.mrb[0].mxu0
        %v1246 = vadd.f32 %v1053, %v1245
        %1247 = vmatprep.mubr.bf16.mxu0 %v471
        %1248 = vmatmul.mubr.bf16.gmra.mrb[0].mxu0 %v470
        %v1249 = vpop.f32.mrb[0].mxu0
        %v1250 = vadd.f32 %v1057, %v1249
        %v1251 = vpop.f32.mrb[0].mxu0
        %v1252 = vadd.f32 %v1059, %v1251
        %v1253 = vpop.f32.mrb[0].mxu0
        %v1254 = vadd.f32 %v1061, %v1253
        %v1255 = vpop.f32.mrb[0].mxu0
        %v1256 = vadd.f32 %v1063, %v1255
        %1257 = vmatprep.mubr.bf16.mxu0 %v475
        %1258 = vmatmul.mubr.bf16.gmra.mrb[0].mxu0 %v474
        %v1259 = vpop.f32.mrb[0].mxu0
        %v1260 = vadd.f32 %v1067, %v1259
        %v1261 = vpop.f32.mrb[0].mxu0
        %v1262 = vadd.f32 %v1069, %v1261
        %v1263 = vpop.f32.mrb[0].mxu0
        %v1264 = vadd.f32 %v1071, %v1263
        %v1265 = vpop.f32.mrb[0].mxu0
        %v1266 = vadd.f32 %v1073, %v1265
        %1267 = vdwg.mxu0
        %1268 = vmatprep.subr.bf16.mxu0 %v735
        %1269 = vmatpush1.bf16.msra.mxu0 %v734
        %1270 = vmatprep.subr.bf16.mxu0 %v739
        %1271 = vmatpush1.bf16.msra.mxu0 %v738
        %1272 = vmatprep.subr.bf16.mxu0 %v743
        %1273 = vmatpush1.bf16.msra.mxu0 %v742
        %1274 = vmatprep.subr.bf16.mxu0 %v747
        %1275 = vmatpush1.bf16.msra.mxu0 %v746
        %1276 = vmatprep.subr.bf16.mxu0 %v751
        %1277 = vmatpush1.bf16.msra.mxu0 %v750
        %1278 = vmatprep.subr.bf16.mxu0 %v755
        %1279 = vmatpush1.bf16.msra.mxu0 %v754
        %1280 = vmatprep.subr.bf16.mxu0 %v759
        %1281 = vmatpush1.bf16.msra.mxu0 %v758
        %1282 = vmatprep.subr.bf16.mxu0 %v763
        %1283 = vmatpush1.bf16.msra.mxu0 %v762
        %1284 = vmatprep.subr.bf16.mxu0 %v767
        %1285 = vmatpush1.bf16.msra.mxu0 %v766
        %1286 = vmatprep.subr.bf16.mxu0 %v771
        %1287 = vmatpush1.bf16.msra.mxu0 %v770
        %1288 = vmatprep.subr.bf16.mxu0 %v775
        %1289 = vmatpush1.bf16.msra.mxu0 %v774
        %1290 = vmatprep.subr.bf16.mxu0 %v779
        %1291 = vmatpush1.bf16.msra.mxu0 %v778
        %1292 = vmatprep.subr.bf16.mxu0 %v783
        %1293 = vmatpush1.bf16.msra.mxu0 %v782
        %1294 = vmatprep.subr.bf16.mxu0 %v787
        %1295 = vmatpush1.bf16.msra.mxu0 %v786
        %1296 = vmatprep.subr.bf16.mxu0 %v791
        %1297 = vmatpush1.bf16.msra.mxu0 %v790
        %1298 = vmatprep.subr.bf16.mxu0 %v795
        %1299 = vmatpush1.bf16.msra.mxu0 %v794
        %1300 = vmatprep.mubr.bf16.mxu0 %v413
        %1301 = vmatmul.mubr.bf16.gmra.mrb[0].mxu0 %v412
        %v1302 = vpop.f32.mrb[0].mxu0
        %v1303 = vadd.f32 %v873, %v1302
        %v1304 = vpop.f32.mrb[0].mxu0
        %v1305 = vadd.f32 %v877, %v1304
        %v1306 = vpop.f32.mrb[0].mxu0
        %v1307 = vadd.f32 %v873, %v1306
        %v1308 = vpop.f32.mrb[0].mxu0
        %v1309 = vadd.f32 %v877, %v1308
        %1310 = vmatprep.mubr.bf16.mxu0 %v417
        %1311 = vmatmul.mubr.bf16.gmra.mrb[0].mxu0 %v416
        %v1312 = vpop.f32.mrb[0].mxu0
        %v1313 = vadd.f32 %v873, %v1312
        %v1314 = vpop.f32.mrb[0].mxu0
        %v1315 = vadd.f32 %v877, %v1314
        %v1316 = vpop.f32.mrb[0].mxu0
        %v1317 = vadd.f32 %v873, %v1316
        %v1318 = vpop.f32.mrb[0].mxu0
        %v1319 = vadd.f32 %v877, %v1318
        %1320 = vmatprep.mubr.bf16.mxu0 %v421
        %1321 = vmatmul.mubr.bf16.gmra.mrb[0].mxu0 %v420
        %v1322 = vpop.f32.mrb[0].mxu0
        %v1323 = vadd.f32 %v873, %v1322
        %v1324 = vpop.f32.mrb[0].mxu0
        %v1325 = vadd.f32 %v877, %v1324
        %v1326 = vpop.f32.mrb[0].mxu0
        %v1327 = vadd.f32 %v873, %v1326
        %v1328 = vpop.f32.mrb[0].mxu0
        %v1329 = vadd.f32 %v877, %v1328
        %1330 = vmatprep.mubr.bf16.mxu0 %v425
        %1331 = vmatmul.mubr.bf16.gmra.mrb[0].mxu0 %v424
        %v1332 = vpop.f32.mrb[0].mxu0
        %v1333 = vadd.f32 %v873, %v1332
        %v1334 = vpop.f32.mrb[0].mxu0
        %v1335 = vadd.f32 %v877, %v1334
        %v1336 = vpop.f32.mrb[0].mxu0
        %v1337 = vadd.f32 %v873, %v1336
        %v1338 = vpop.f32.mrb[0].mxu0
        %v1339 = vadd.f32 %v877, %v1338
        %1340 = vmatprep.mubr.bf16.mxu0 %v429
        %1341 = vmatmul.mubr.bf16.gmra.mrb[0].mxu0 %v428
        %v1342 = vpop.f32.mrb[0].mxu0
        %v1343 = vadd.f32 %v873, %v1342
        %v1344 = vpop.f32.mrb[0].mxu0
        %v1345 = vadd.f32 %v877, %v1344
        %v1346 = vpop.f32.mrb[0].mxu0
        %v1347 = vadd.f32 %v873, %v1346
        %v1348 = vpop.f32.mrb[0].mxu0
        %v1349 = vadd.f32 %v877, %v1348
        %1350 = vmatprep.mubr.bf16.mxu0 %v433
        %1351 = vmatmul.mubr.bf16.gmra.mrb[0].mxu0 %v432
        %v1352 = vpop.f32.mrb[0].mxu0
        %v1353 = vadd.f32 %v873, %v1352
        %v1354 = vpop.f32.mrb[0].mxu0
        %v1355 = vadd.f32 %v877, %v1354
        %v1356 = vpop.f32.mrb[0].mxu0
        %v1357 = vadd.f32 %v873, %v1356
        %v1358 = vpop.f32.mrb[0].mxu0
        %v1359 = vadd.f32 %v877, %v1358
        %1360 = vmatprep.mubr.bf16.mxu0 %v437
        %1361 = vmatmul.mubr.bf16.gmra.mrb[0].mxu0 %v436
        %v1362 = vpop.f32.mrb[0].mxu0
        %v1363 = vadd.f32 %v873, %v1362
        %v1364 = vpop.f32.mrb[0].mxu0
        %v1365 = vadd.f32 %v877, %v1364
        %v1366 = vpop.f32.mrb[0].mxu0
        %v1367 = vadd.f32 %v873, %v1366
        %v1368 = vpop.f32.mrb[0].mxu0
        %v1369 = vadd.f32 %v877, %v1368
        %1370 = vmatprep.mubr.bf16.mxu0 %v441
        %1371 = vmatmul.mubr.bf16.gmra.mrb[0].mxu0 %v440
        %v1372 = vpop.f32.mrb[0].mxu0
        %v1373 = vadd.f32 %v873, %v1372
        %v1374 = vpop.f32.mrb[0].mxu0
        %v1375 = vadd.f32 %v877, %v1374
        %v1376 = vpop.f32.mrb[0].mxu0
        %v1377 = vadd.f32 %v873, %v1376
        %v1378 = vpop.f32.mrb[0].mxu0
        %v1379 = vadd.f32 %v877, %v1378
        %1380 = vmatprep.mubr.bf16.mxu0 %v445
        %1381 = vmatmul.mubr.bf16.gmra.mrb[0].mxu0 %v444
        %v1382 = vpop.f32.mrb[0].mxu0
        %v1383 = vadd.f32 %v873, %v1382
        %v1384 = vpop.f32.mrb[0].mxu0
        %v1385 = vadd.f32 %v877, %v1384
        %v1386 = vpop.f32.mrb[0].mxu0
        %v1387 = vadd.f32 %v873, %v1386
        %v1388 = vpop.f32.mrb[0].mxu0
        %v1389 = vadd.f32 %v877, %v1388
        %1390 = vmatprep.mubr.bf16.mxu0 %v449
        %1391 = vmatmul.mubr.bf16.gmra.mrb[0].mxu0 %v448
        %v1392 = vpop.f32.mrb[0].mxu0
        %v1393 = vadd.f32 %v873, %v1392
        %v1394 = vpop.f32.mrb[0].mxu0
        %v1395 = vadd.f32 %v877, %v1394
        %v1396 = vpop.f32.mrb[0].mxu0
        %v1397 = vadd.f32 %v873, %v1396
        %v1398 = vpop.f32.mrb[0].mxu0
        %v1399 = vadd.f32 %v877, %v1398
        %1400 = vmatprep.mubr.bf16.mxu0 %v453
        %1401 = vmatmul.mubr.bf16.gmra.mrb[0].mxu0 %v452
        %v1402 = vpop.f32.mrb[0].mxu0
        %v1403 = vadd.f32 %v873, %v1402
        %v1404 = vpop.f32.mrb[0].mxu0
        %v1405 = vadd.f32 %v877, %v1404
        %v1406 = vpop.f32.mrb[0].mxu0
        %v1407 = vadd.f32 %v873, %v1406
        %v1408 = vpop.f32.mrb[0].mxu0
        %v1409 = vadd.f32 %v877, %v1408
        %1410 = vmatprep.mubr.bf16.mxu0 %v457
        %1411 = vmatmul.mubr.bf16.gmra.mrb[0].mxu0 %v456
        %v1412 = vpop.f32.mrb[0].mxu0
        %v1413 = vadd.f32 %v873, %v1412
        %v1414 = vpop.f32.mrb[0].mxu0
        %v1415 = vadd.f32 %v877, %v1414
        %v1416 = vpop.f32.mrb[0].mxu0
        %v1417 = vadd.f32 %v873, %v1416
        %v1418 = vpop.f32.mrb[0].mxu0
        %v1419 = vadd.f32 %v877, %v1418
        %1420 = vmatprep.mubr.bf16.mxu0 %v461
        %1421 = vmatmul.mubr.bf16.gmra.mrb[0].mxu0 %v460
        %v1422 = vpop.f32.mrb[0].mxu0
        %v1423 = vadd.f32 %v873, %v1422
        %v1424 = vpop.f32.mrb[0].mxu0
        %v1425 = vadd.f32 %v877, %v1424
        %v1426 = vpop.f32.mrb[0].mxu0
        %v1427 = vadd.f32 %v873, %v1426
        %v1428 = vpop.f32.mrb[0].mxu0
        %v1429 = vadd.f32 %v877, %v1428
        %1430 = vmatprep.mubr.bf16.mxu0 %v465
        %1431 = vmatmul.mubr.bf16.gmra.mrb[0].mxu0 %v464
        %v1432 = vpop.f32.mrb[0].mxu0
        %v1433 = vadd.f32 %v873, %v1432
        %v1434 = vpop.f32.mrb[0].mxu0
        %v1435 = vadd.f32 %v877, %v1434
        %v1436 = vpop.f32.mrb[0].mxu0
        %v1437 = vadd.f32 %v873, %v1436
        %v1438 = vpop.f32.mrb[0].mxu0
        %v1439 = vadd.f32 %v877, %v1438
        %1440 = vmatprep.mubr.bf16.mxu0 %v469
        %1441 = vmatmul.mubr.bf16.gmra.mrb[0].mxu0 %v468
        %v1442 = vpop.f32.mrb[0].mxu0
        %v1443 = vadd.f32 %v873, %v1442
        %v1444 = vpop.f32.mrb[0].mxu0
        %v1445 = vadd.f32 %v877, %v1444
        %v1446 = vpop.f32.mrb[0].mxu0
        %v1447 = vadd.f32 %v873, %v1446
        %v1448 = vpop.f32.mrb[0].mxu0
        %v1449 = vadd.f32 %v877, %v1448
        %1450 = vmatprep.mubr.bf16.mxu0 %v473
        %1451 = vmatmul.mubr.bf16.gmra.mrb[0].mxu0 %v472
        %v1452 = vpop.f32.mrb[0].mxu0
        %v1453 = vadd.f32 %v873, %v1452
        %v1454 = vpop.f32.mrb[0].mxu0
        %v1455 = vadd.f32 %v877, %v1454
        %v1456 = vpop.f32.mrb[0].mxu0
        %v1457 = vadd.f32 %v873, %v1456
        %v1458 = vpop.f32.mrb[0].mxu0
        %v1459 = vadd.f32 %v877, %v1458
        %1460 = vdwg.mxu0
        %1461 = vmatprep.subr.bf16.mxu0 %v799
        %1462 = vmatpush1.bf16.msra.mxu0 %v798
        %1463 = vmatprep.subr.bf16.mxu0 %v803
        %1464 = vmatpush1.bf16.msra.mxu0 %v802
        %1465 = vmatprep.subr.bf16.mxu0 %v807
        %1466 = vmatpush1.bf16.msra.mxu0 %v806
        %1467 = vmatprep.subr.bf16.mxu0 %v811
        %1468 = vmatpush1.bf16.msra.mxu0 %v810
        %1469 = vmatprep.subr.bf16.mxu0 %v815
        %1470 = vmatpush1.bf16.msra.mxu0 %v814
        %1471 = vmatprep.subr.bf16.mxu0 %v819
        %1472 = vmatpush1.bf16.msra.mxu0 %v818
        %1473 = vmatprep.subr.bf16.mxu0 %v823
        %1474 = vmatpush1.bf16.msra.mxu0 %v822
        %1475 = vmatprep.subr.bf16.mxu0 %v827
        %1476 = vmatpush1.bf16.msra.mxu0 %v826
        %1477 = vmatprep.subr.bf16.mxu0 %v831
        %1478 = vmatpush1.bf16.msra.mxu0 %v830
        %1479 = vmatprep.subr.bf16.mxu0 %v835
        %1480 = vmatpush1.bf16.msra.mxu0 %v834
        %1481 = vmatprep.subr.bf16.mxu0 %v839
        %1482 = vmatpush1.bf16.msra.mxu0 %v838
        %1483 = vmatprep.subr.bf16.mxu0 %v843
        %1484 = vmatpush1.bf16.msra.mxu0 %v842
        %1485 = vmatprep.subr.bf16.mxu0 %v847
        %1486 = vmatpush1.bf16.msra.mxu0 %v846
        %1487 = vmatprep.subr.bf16.mxu0 %v851
        %1488 = vmatpush1.bf16.msra.mxu0 %v850
        %1489 = vmatprep.subr.bf16.mxu0 %v855
        %1490 = vmatpush1.bf16.msra.mxu0 %v854
        %1491 = vmatprep.subr.bf16.mxu0 %v859
        %1492 = vmatpush1.bf16.msra.mxu0 %v858
        %1493 = vmatprep.mubr.bf16.mxu0 %v415
        %1494 = vmatmul.mubr.bf16.gmra.mrb[0].mxu0 %v414
        %v1495 = vpop.f32.mrb[0].mxu0
        %v1496 = vadd.f32 %v1303, %v1495
        %v1497 = vpop.f32.mrb[0].mxu0
        %v1498 = vadd.f32 %v1305, %v1497
        %v1499 = vpop.f32.mrb[0].mxu0
        %v1500 = vadd.f32 %v1307, %v1499
        %v1501 = vpop.f32.mrb[0].mxu0
        %v1502 = vadd.f32 %v1309, %v1501
        %1503 = vmatprep.mubr.bf16.mxu0 %v419
        %1504 = vmatmul.mubr.bf16.gmra.mrb[0].mxu0 %v418
        %v1505 = vpop.f32.mrb[0].mxu0
        %v1506 = vadd.f32 %v1313, %v1505
        %v1507 = vpop.f32.mrb[0].mxu0
        %v1508 = vadd.f32 %v1315, %v1507
        %v1509 = vpop.f32.mrb[0].mxu0
        %v1510 = vadd.f32 %v1317, %v1509
        %v1511 = vpop.f32.mrb[0].mxu0
        %v1512 = vadd.f32 %v1319, %v1511
        %1513 = vmatprep.mubr.bf16.mxu0 %v423
        %1514 = vmatmul.mubr.bf16.gmra.mrb[0].mxu0 %v422
        %v1515 = vpop.f32.mrb[0].mxu0
        %v1516 = vadd.f32 %v1323, %v1515
        %v1517 = vpop.f32.mrb[0].mxu0
        %v1518 = vadd.f32 %v1325, %v1517
        %v1519 = vpop.f32.mrb[0].mxu0
        %v1520 = vadd.f32 %v1327, %v1519
        %v1521 = vpop.f32.mrb[0].mxu0
        %v1522 = vadd.f32 %v1329, %v1521
        %1523 = vmatprep.mubr.bf16.mxu0 %v427
        %1524 = vmatmul.mubr.bf16.gmra.mrb[0].mxu0 %v426
        %v1525 = vpop.f32.mrb[0].mxu0
        %v1526 = vadd.f32 %v1333, %v1525
        %v1527 = vpop.f32.mrb[0].mxu0
        %v1528 = vadd.f32 %v1335, %v1527
        %v1529 = vpop.f32.mrb[0].mxu0
        %v1530 = vadd.f32 %v1337, %v1529
        %v1531 = vpop.f32.mrb[0].mxu0
        %v1532 = vadd.f32 %v1339, %v1531
        %1533 = vmatprep.mubr.bf16.mxu0 %v431
        %1534 = vmatmul.mubr.bf16.gmra.mrb[0].mxu0 %v430
        %v1535 = vpop.f32.mrb[0].mxu0
        %v1536 = vadd.f32 %v1343, %v1535
        %v1537 = vpop.f32.mrb[0].mxu0
        %v1538 = vadd.f32 %v1345, %v1537
        %v1539 = vpop.f32.mrb[0].mxu0
        %v1540 = vadd.f32 %v1347, %v1539
        %v1541 = vpop.f32.mrb[0].mxu0
        %v1542 = vadd.f32 %v1349, %v1541
        %1543 = vmatprep.mubr.bf16.mxu0 %v435
        %1544 = vmatmul.mubr.bf16.gmra.mrb[0].mxu0 %v434
        %v1545 = vpop.f32.mrb[0].mxu0
        %v1546 = vadd.f32 %v1353, %v1545
        %v1547 = vpop.f32.mrb[0].mxu0
        %v1548 = vadd.f32 %v1355, %v1547
        %v1549 = vpop.f32.mrb[0].mxu0
        %v1550 = vadd.f32 %v1357, %v1549
        %v1551 = vpop.f32.mrb[0].mxu0
        %v1552 = vadd.f32 %v1359, %v1551
        %1553 = vmatprep.mubr.bf16.mxu0 %v439
        %1554 = vmatmul.mubr.bf16.gmra.mrb[0].mxu0 %v438
        %v1555 = vpop.f32.mrb[0].mxu0
        %v1556 = vadd.f32 %v1363, %v1555
        %v1557 = vpop.f32.mrb[0].mxu0
        %v1558 = vadd.f32 %v1365, %v1557
        %v1559 = vpop.f32.mrb[0].mxu0
        %v1560 = vadd.f32 %v1367, %v1559
        %v1561 = vpop.f32.mrb[0].mxu0
        %v1562 = vadd.f32 %v1369, %v1561
        %1563 = vmatprep.mubr.bf16.mxu0 %v443
        %1564 = vmatmul.mubr.bf16.gmra.mrb[0].mxu0 %v442
        %v1565 = vpop.f32.mrb[0].mxu0
        %v1566 = vadd.f32 %v1373, %v1565
        %v1567 = vpop.f32.mrb[0].mxu0
        %v1568 = vadd.f32 %v1375, %v1567
        %v1569 = vpop.f32.mrb[0].mxu0
        %v1570 = vadd.f32 %v1377, %v1569
        %v1571 = vpop.f32.mrb[0].mxu0
        %v1572 = vadd.f32 %v1379, %v1571
        %1573 = vmatprep.mubr.bf16.mxu0 %v447
        %1574 = vmatmul.mubr.bf16.gmra.mrb[0].mxu0 %v446
        %v1575 = vpop.f32.mrb[0].mxu0
        %v1576 = vadd.f32 %v1383, %v1575
        %v1577 = vpop.f32.mrb[0].mxu0
        %v1578 = vadd.f32 %v1385, %v1577
        %v1579 = vpop.f32.mrb[0].mxu0
        %v1580 = vadd.f32 %v1387, %v1579
        %v1581 = vpop.f32.mrb[0].mxu0
        %v1582 = vadd.f32 %v1389, %v1581
        %1583 = vmatprep.mubr.bf16.mxu0 %v451
        %1584 = vmatmul.mubr.bf16.gmra.mrb[0].mxu0 %v450
        %v1585 = vpop.f32.mrb[0].mxu0
        %v1586 = vadd.f32 %v1393, %v1585
        %v1587 = vpop.f32.mrb[0].mxu0
        %v1588 = vadd.f32 %v1395, %v1587
        %v1589 = vpop.f32.mrb[0].mxu0
        %v1590 = vadd.f32 %v1397, %v1589
        %v1591 = vpop.f32.mrb[0].mxu0
        %v1592 = vadd.f32 %v1399, %v1591
        %1593 = vmatprep.mubr.bf16.mxu0 %v455
        %1594 = vmatmul.mubr.bf16.gmra.mrb[0].mxu0 %v454
        %v1595 = vpop.f32.mrb[0].mxu0
        %v1596 = vadd.f32 %v1403, %v1595
        %v1597 = vpop.f32.mrb[0].mxu0
        %v1598 = vadd.f32 %v1405, %v1597
        %v1599 = vpop.f32.mrb[0].mxu0
        %v1600 = vadd.f32 %v1407, %v1599
        %v1601 = vpop.f32.mrb[0].mxu0
        %v1602 = vadd.f32 %v1409, %v1601
        %1603 = vmatprep.mubr.bf16.mxu0 %v459
        %1604 = vmatmul.mubr.bf16.gmra.mrb[0].mxu0 %v458
        %v1605 = vpop.f32.mrb[0].mxu0
        %v1606 = vadd.f32 %v1413, %v1605
        %v1607 = vpop.f32.mrb[0].mxu0
        %v1608 = vadd.f32 %v1415, %v1607
        %v1609 = vpop.f32.mrb[0].mxu0
        %v1610 = vadd.f32 %v1417, %v1609
        %v1611 = vpop.f32.mrb[0].mxu0
        %v1612 = vadd.f32 %v1419, %v1611
        %1613 = vmatprep.mubr.bf16.mxu0 %v463
        %1614 = vmatmul.mubr.bf16.gmra.mrb[0].mxu0 %v462
        %v1615 = vpop.f32.mrb[0].mxu0
        %v1616 = vadd.f32 %v1423, %v1615
        %v1617 = vpop.f32.mrb[0].mxu0
        %v1618 = vadd.f32 %v1425, %v1617
        %v1619 = vpop.f32.mrb[0].mxu0
        %v1620 = vadd.f32 %v1427, %v1619
        %v1621 = vpop.f32.mrb[0].mxu0
        %v1622 = vadd.f32 %v1429, %v1621
        %1623 = vmatprep.mubr.bf16.mxu0 %v467
        %1624 = vmatmul.mubr.bf16.gmra.mrb[0].mxu0 %v466
        %v1625 = vpop.f32.mrb[0].mxu0
        %v1626 = vadd.f32 %v1433, %v1625
        %v1627 = vpop.f32.mrb[0].mxu0
        %v1628 = vadd.f32 %v1435, %v1627
        %v1629 = vpop.f32.mrb[0].mxu0
        %v1630 = vadd.f32 %v1437, %v1629
        %v1631 = vpop.f32.mrb[0].mxu0
        %v1632 = vadd.f32 %v1439, %v1631
        %1633 = vmatprep.mubr.bf16.mxu0 %v471
        %1634 = vmatmul.mubr.bf16.gmra.mrb[0].mxu0 %v470
        %v1635 = vpop.f32.mrb[0].mxu0
        %v1636 = vadd.f32 %v1443, %v1635
        %v1637 = vpop.f32.mrb[0].mxu0
        %v1638 = vadd.f32 %v1445, %v1637
        %v1639 = vpop.f32.mrb[0].mxu0
        %v1640 = vadd.f32 %v1447, %v1639
        %v1641 = vpop.f32.mrb[0].mxu0
        %v1642 = vadd.f32 %v1449, %v1641
        %1643 = vmatprep.mubr.bf16.mxu0 %v475
        %1644 = vmatmul.mubr.bf16.gmra.mrb[0].mxu0 %v474
        %v1645 = vpop.f32.mrb[0].mxu0
        %v1646 = vadd.f32 %v1453, %v1645
        %v1647 = vpop.f32.mrb[0].mxu0
        %v1648 = vadd.f32 %v1455, %v1647
        %v1649 = vpop.f32.mrb[0].mxu0
        %v1650 = vadd.f32 %v1457, %v1649
        %v1651 = vpop.f32.mrb[0].mxu0
        %v1652 = vadd.f32 %v1459, %v1651
        %1653 = vdwg.mxu0
        %1654 = vst [vmem:[%s278] sm:$0xff] %v1110
        %1655 = vst [vmem:[%s278 + $0x8] sm:$0xff] %v1112
        %1656 = vst [vmem:[%s278 + $0x10] sm:$0xff] %v1496
        %1657 = vst [vmem:[%s278 + $0x18] sm:$0xff] %v1498
        %1658 = vst [vmem:[%s278 + $0x20] sm:$0xff] %v1114
        %1659 = vst [vmem:[%s278 + $0x28] sm:$0xff] %v1116
        %1660 = vst [vmem:[%s278 + $0x30] sm:$0xff] %v1500
        %1661 = vst [vmem:[%s278 + $0x38] sm:$0xff] %v1502
        %1662 = vst [vmem:[%s278 + $0x40] sm:$0xff] %v1120
        %1663 = vst [vmem:[%s278 + $0x48] sm:$0xff] %v1122
        %1664 = vst [vmem:[%s278 + $0x50] sm:$0xff] %v1506
        %1665 = vst [vmem:[%s278 + $0x58] sm:$0xff] %v1508
        %1666 = vst [vmem:[%s278 + $0x60] sm:$0xff] %v1124
        %1667 = vst [vmem:[%s278 + $0x68] sm:$0xff] %v1126
        %1668 = vst [vmem:[%s278 + $0x70] sm:$0xff] %v1510
        %1669 = vst [vmem:[%s278 + $0x78] sm:$0xff] %v1512
        %1670 = vst [vmem:[%s278 + $0x80] sm:$0xff] %v1130
        %1671 = vst [vmem:[%s278 + $0x88] sm:$0xff] %v1132
        %1672 = vst [vmem:[%s278 + $0x90] sm:$0xff] %v1516
        %1673 = vst [vmem:[%s278 + $0x98] sm:$0xff] %v1518
        %1674 = vst [vmem:[%s278 + $0xa0] sm:$0xff] %v1134
        %1675 = vst [vmem:[%s278 + $0xa8] sm:$0xff] %v1136
        %1676 = vst [vmem:[%s278 + $0xb0] sm:$0xff] %v1520
        %1677 = vst [vmem:[%s278 + $0xb8] sm:$0xff] %v1522
        %1678 = vst [vmem:[%s278 + $0xc0] sm:$0xff] %v1140
        %1679 = vst [vmem:[%s278 + $0xc8] sm:$0xff] %v1142
        %1680 = vst [vmem:[%s278 + $0xd0] sm:$0xff] %v1526
        %1681 = vst [vmem:[%s278 + $0xd8] sm:$0xff] %v1528
        %1682 = vst [vmem:[%s278 + $0xe0] sm:$0xff] %v1144
        %1683 = vst [vmem:[%s278 + $0xe8] sm:$0xff] %v1146
        %1684 = vst [vmem:[%s278 + $0xf0] sm:$0xff] %v1530
        %1685 = vst [vmem:[%s278 + $0xf8] sm:$0xff] %v1532
        %1686 = vst [vmem:[%s278 + $0x100] sm:$0xff] %v1150
        %1687 = vst [vmem:[%s278 + $0x108] sm:$0xff] %v1152
        %1688 = vst [vmem:[%s278 + $0x110] sm:$0xff] %v1536
        %1689 = vst [vmem:[%s278 + $0x118] sm:$0xff] %v1538
        %1690 = vst [vmem:[%s278 + $0x120] sm:$0xff] %v1154
        %1691 = vst [vmem:[%s278 + $0x128] sm:$0xff] %v1156
        %1692 = vst [vmem:[%s278 + $0x130] sm:$0xff] %v1540
        %1693 = vst [vmem:[%s278 + $0x138] sm:$0xff] %v1542
        %1694 = vst [vmem:[%s278 + $0x140] sm:$0xff] %v1160
        %1695 = vst [vmem:[%s278 + $0x148] sm:$0xff] %v1162
        %1696 = vst [vmem:[%s278 + $0x150] sm:$0xff] %v1546
        %1697 = vst [vmem:[%s278 + $0x158] sm:$0xff] %v1548
        %1698 = vst [vmem:[%s278 + $0x160] sm:$0xff] %v1164
        %1699 = vst [vmem:[%s278 + $0x168] sm:$0xff] %v1166
        %1700 = vst [vmem:[%s278 + $0x170] sm:$0xff] %v1550
        %1701 = vst [vmem:[%s278 + $0x178] sm:$0xff] %v1552
        %1702 = vst [vmem:[%s278 + $0x180] sm:$0xff] %v1170
        %1703 = vst [vmem:[%s278 + $0x188] sm:$0xff] %v1172
        %1704 = vst [vmem:[%s278 + $0x190] sm:$0xff] %v1556
        %1705 = vst [vmem:[%s278 + $0x198] sm:$0xff] %v1558
        %1706 = vst [vmem:[%s278 + $0x1a0] sm:$0xff] %v1174
        %1707 = vst [vmem:[%s278 + $0x1a8] sm:$0xff] %v1176
        %1708 = vst [vmem:[%s278 + $0x1b0] sm:$0xff] %v1560
        %1709 = vst [vmem:[%s278 + $0x1b8] sm:$0xff] %v1562
        %1710 = vst [vmem:[%s278 + $0x1c0] sm:$0xff] %v1180
        %1711 = vst [vmem:[%s278 + $0x1c8] sm:$0xff] %v1182
        %1712 = vst [vmem:[%s278 + $0x1d0] sm:$0xff] %v1566
        %1713 = vst [vmem:[%s278 + $0x1d8] sm:$0xff] %v1568
        %1714 = vst [vmem:[%s278 + $0x1e0] sm:$0xff] %v1184
        %1715 = vst [vmem:[%s278 + $0x1e8] sm:$0xff] %v1186
        %1716 = vst [vmem:[%s278 + $0x1f0] sm:$0xff] %v1570
        %1717 = vst [vmem:[%s278 + $0x1f8] sm:$0xff] %v1572
        %1718 = vst [vmem:[%s278 + $0x200] sm:$0xff] %v1190
        %1719 = vst [vmem:[%s278 + $0x208] sm:$0xff] %v1192
        %1720 = vst [vmem:[%s278 + $0x210] sm:$0xff] %v1576
        %1721 = vst [vmem:[%s278 + $0x218] sm:$0xff] %v1578
        %1722 = vst [vmem:[%s278 + $0x220] sm:$0xff] %v1194
        %1723 = vst [vmem:[%s278 + $0x228] sm:$0xff] %v1196
        %1724 = vst [vmem:[%s278 + $0x230] sm:$0xff] %v1580
        %1725 = vst [vmem:[%s278 + $0x238] sm:$0xff] %v1582
        %1726 = vst [vmem:[%s278 + $0x240] sm:$0xff] %v1200
        %1727 = vst [vmem:[%s278 + $0x248] sm:$0xff] %v1202
        %1728 = vst [vmem:[%s278 + $0x250] sm:$0xff] %v1586
        %1729 = vst [vmem:[%s278 + $0x258] sm:$0xff] %v1588
        %1730 = vst [vmem:[%s278 + $0x260] sm:$0xff] %v1204
        %1731 = vst [vmem:[%s278 + $0x268] sm:$0xff] %v1206
        %1732 = vst [vmem:[%s278 + $0x270] sm:$0xff] %v1590
        %1733 = vst [vmem:[%s278 + $0x278] sm:$0xff] %v1592
        %1734 = vst [vmem:[%s278 + $0x280] sm:$0xff] %v1210
        %1735 = vst [vmem:[%s278 + $0x288] sm:$0xff] %v1212
        %1736 = vst [vmem:[%s278 + $0x290] sm:$0xff] %v1596
        %1737 = vst [vmem:[%s278 + $0x298] sm:$0xff] %v1598
        %1738 = vst [vmem:[%s278 + $0x2a0] sm:$0xff] %v1214
        %1739 = vst [vmem:[%s278 + $0x2a8] sm:$0xff] %v1216
        %1740 = vst [vmem:[%s278 + $0x2b0] sm:$0xff] %v1600
        %1741 = vst [vmem:[%s278 + $0x2b8] sm:$0xff] %v1602
        %1742 = vst [vmem:[%s278 + $0x2c0] sm:$0xff] %v1220
        %1743 = vst [vmem:[%s278 + $0x2c8] sm:$0xff] %v1222
        %1744 = vst [vmem:[%s278 + $0x2d0] sm:$0xff] %v1606
        %1745 = vst [vmem:[%s278 + $0x2d8] sm:$0xff] %v1608
        %1746 = vst [vmem:[%s278 + $0x2e0] sm:$0xff] %v1224
        %1747 = vst [vmem:[%s278 + $0x2e8] sm:$0xff] %v1226
        %1748 = vst [vmem:[%s278 + $0x2f0] sm:$0xff] %v1610
        %1749 = vst [vmem:[%s278 + $0x2f8] sm:$0xff] %v1612
        %1750 = vst [vmem:[%s278 + $0x300] sm:$0xff] %v1230
        %1751 = vst [vmem:[%s278 + $0x308] sm:$0xff] %v1232
        %1752 = vst [vmem:[%s278 + $0x310] sm:$0xff] %v1616
        %1753 = vst [vmem:[%s278 + $0x318] sm:$0xff] %v1618
        %1754 = vst [vmem:[%s278 + $0x320] sm:$0xff] %v1234
        %1755 = vst [vmem:[%s278 + $0x328] sm:$0xff] %v1236
        %1756 = vst [vmem:[%s278 + $0x330] sm:$0xff] %v1620
        %1757 = vst [vmem:[%s278 + $0x338] sm:$0xff] %v1622
        %1758 = vst [vmem:[%s278 + $0x340] sm:$0xff] %v1240
        %1759 = vst [vmem:[%s278 + $0x348] sm:$0xff] %v1242
        %1760 = vst [vmem:[%s278 + $0x350] sm:$0xff] %v1626
        %1761 = vst [vmem:[%s278 + $0x358] sm:$0xff] %v1628
        %1762 = vst [vmem:[%s278 + $0x360] sm:$0xff] %v1244
        %1763 = vst [vmem:[%s278 + $0x368] sm:$0xff] %v1246
        %1764 = vst [vmem:[%s278 + $0x370] sm:$0xff] %v1630
        %1765 = vst [vmem:[%s278 + $0x378] sm:$0xff] %v1632
        %1766 = vst [vmem:[%s278 + $0x380] sm:$0xff] %v1250
        %1767 = vst [vmem:[%s278 + $0x388] sm:$0xff] %v1252
        %1768 = vst [vmem:[%s278 + $0x390] sm:$0xff] %v1636
        %1769 = vst [vmem:[%s278 + $0x398] sm:$0xff] %v1638
        %1770 = vst [vmem:[%s278 + $0x3a0] sm:$0xff] %v1254
        %1771 = vst [vmem:[%s278 + $0x3a8] sm:$0xff] %v1256
        %1772 = vst [vmem:[%s278 + $0x3b0] sm:$0xff] %v1640
        %1773 = vst [vmem:[%s278 + $0x3b8] sm:$0xff] %v1642
        %1774 = vst [vmem:[%s278 + $0x3c0] sm:$0xff] %v1260
        %1775 = vst [vmem:[%s278 + $0x3c8] sm:$0xff] %v1262
        %1776 = vst [vmem:[%s278 + $0x3d0] sm:$0xff] %v1646
        %1777 = vst [vmem:[%s278 + $0x3d8] sm:$0xff] %v1648
        %1778 = vst [vmem:[%s278 + $0x3e0] sm:$0xff] %v1264
        %1779 = vst [vmem:[%s278 + $0x3e8] sm:$0xff] %v1266
        %1780 = vst [vmem:[%s278 + $0x3f0] sm:$0xff] %v1650
        %1781 = vst [vmem:[%s278 + $0x3f8] sm:$0xff] %v1652
        %s1782 = sand.u32 %s123, 1
        %s1783 = scalar_lea.sflag [#allocation4], %s1782
        %s1784 = sand.u32 %s123, 1
        %s1785 = smul.addr %s1784, 1024
        %s1786 = scalar_lea.vmem [#allocation8], %s1785
        // Predicated region
        $region45: #{tpu_custom_call.1} parent=31 // pred_check
          %p1787 = pneg %p133
        $region46: #{tpu_custom_call.1} parent=31 // pred_check_branch
          %1789 = sbr.rel (%p1787) target = $region48
        $region47: #{tpu_custom_call.1} parent=31 // pred_region
          %s1790 = smul.u32 32, %s27
          %s1791 = smul.u32 4, %s28
          %s1793 = ssub.s32 16384, 16384
          %1794 = vsyncadd %s1783, %s1793
          %s1795 = smul.addr %s1790, 12
          %s1796 = sadd.s32 %s1791, %s1795
          %s1797 = smul.addr %s1796, 128
          %s1798 = scalar_lea.hbm %s3, %s1797
          %s1799 = sshll.u32 %s1786, 4
          %s1800 = int_to_ptr.vmem [resolvable:$true] %s1799
          %1805 = dma.vmem_to_hbm [thread:$0]  %s1800, 16384, %s1798, %s1783, 512, 1536, 32
        $region48: #{tpu_custom_call.1} parent=31 // pred_fallthru
          _
      $region32: #{tpu_custom_call.1} parent=5 // pred_fallthru
        _
      %p1806 = scmp.le.s32.totalorder 2, %s18
      // Predicated region
      $region49: #{tpu_custom_call.1} parent=5 // pred_check
        %p1807 = pneg %p1806
      $region50: #{tpu_custom_call.1} parent=5 // pred_check_branch
        %1809 = sbr.rel (%p1807) target = $region52
      $region51: #{tpu_custom_call.1} parent=5 // pred_region
        %s1810 = ssub.s32 %s18, 2
        // Predicated region
        $region53: #{tpu_custom_call.1} parent=51 // pred_check
          %p1811 = pneg %p139
        $region54: #{tpu_custom_call.1} parent=51 // pred_check_branch
          %1813 = sbr.rel (%p1811) target = $region56
        $region55: #{tpu_custom_call.1} parent=51 // pred_region
          %s1814 = sand.u32 %s124, 1
          %s1815 = scalar_lea.sflag [#allocation4], %s1814
          %s1816 = sand.u32 %s124, 1
          %s1817 = smul.addr %s1816, 1024
          %s1818 = scalar_lea.vmem [#allocation8], %s1817
          %1819 = dma.done %s1815, 16384
        $region56: #{tpu_custom_call.1} parent=51 // pred_fallthru
          _
      $region52: #{tpu_custom_call.1} parent=5 // pred_fallthru
        _
    $region6: #{tpu_custom_call.1} parent=1 // loop_footer
      %s22 = sadd.s32 1, %s18
    $region7: #{tpu_custom_call.1} parent=1 // loop_footer_branch
      %17 = sbr.rel target = $region3
    $region8: #{tpu_custom_call.1} parent=1 // loop_exit
      _
    %1820 = vsyncpa [#allocation3], 1
    %s1821 = scalar_lea.sflag [#allocation3], 1
    %1822 = vsyncpa %s1821, 1
    %1823 = vsyncpa [#allocation6], 1
    %s1824 = scalar_lea.sflag [#allocation6], 1
    %1825 = vsyncpa %s1824, 1
    %1826 = vsyncpa [#allocation4], 1
    %s1827 = scalar_lea.sflag [#allocation4], 1
    %1828 = vsyncpa %s1827, 1

</llo_original>
